<compile_context>
chip_gen: v7x
topology: tpu7x:2x2x1
jax: 0.10.0
libtpu: 0.0.40
codegen_flags: <defaults>
</compile_context>

<pallas_src>
import math
import jax
import jax.numpy as jnp
from jax.experimental import pallas as pl
from jax.experimental.pallas import tpu as pltpu

D_MODEL = 32
FFN_HIDDEN = 64
N_HEAD = 4
SEQ = 8
BSZ = 2
LN_EPS = 1e-5  # PyTorch nn.LayerNorm default

# rows of the packed small-parameter slab (see _pack_vectors)
_ROW_BQKV, _ROW_BO, _ROW_G1, _ROW_BT1, _ROW_B1, _ROW_B2, _ROW_G2, _ROW_BT2 = range(8)


def memorizing_layer_kernel(x_ref, wqkv_ref, wo_ref, w1_ref, w2_ref, vec_ref, o_ref):
    B, S, D = x_ref.shape
    H = N_HEAD
    dh = D // H
    ffn = w1_ref.shape[1]
    scale = 1.0 / math.sqrt(dh)

    x3 = x_ref[...].astype(jnp.float32)          # (B, S, D)
    x2 = x3.reshape(B * S, D)                    # (B*S, D) — all dense math on this view

    vec = vec_ref[...]                           # (8, 3D) packed biases / LN params
    bqkv = vec[_ROW_BQKV:_ROW_BQKV + 1, :3 * D]
    bo = vec[_ROW_BO:_ROW_BO + 1, :D]
    g1 = vec[_ROW_G1:_ROW_G1 + 1, :D]
    bt1 = vec[_ROW_BT1:_ROW_BT1 + 1, :D]
    b1 = vec[_ROW_B1:_ROW_B1 + 1, :ffn]
    b2 = vec[_ROW_B2:_ROW_B2 + 1, :D]
    g2 = vec[_ROW_G2:_ROW_G2 + 1, :D]
    bt2 = vec[_ROW_BT2:_ROW_BT2 + 1, :D]

    # --- fused QKV projection: one MXU pass instead of three ---
    qkv = jnp.dot(x2, wqkv_ref[...], preferred_element_type=jnp.float32) + bqkv
    q = qkv[:, 0:D].reshape(B, S, D)
    k = qkv[:, D:2 * D].reshape(B, S, D)
    v = qkv[:, 2 * D:3 * D].reshape(B, S, D)

    # --- multi-head self-attention, batched over the batch dim ---
    scores = []
    for h in range(H):                           # static loop over heads
        sl = slice(h * dh, (h + 1) * dh)
        scores.append(jnp.einsum('bqd,bkd->bqk', q[:, :, sl], k[:, :, sl],
                                 preferred_element_type=jnp.float32))
    s = jnp.stack(scores, axis=0) * scale        # (H, B, S, S)

    # single fused stabilized softmax over all heads / batches
    s = s - jnp.max(s, axis=-1, keepdims=True)
    p = jnp.exp(s)
    p = p * pl.reciprocal(jnp.sum(p, axis=-1, keepdims=True), approx=True)

    head_outs = []
    for h in range(H):
        sl = slice(h * dh, (h + 1) * dh)
        head_outs.append(jnp.einsum('bqk,bkd->bqd', p[h], v[:, :, sl],
                                    preferred_element_type=jnp.float32))
    attn = jnp.concatenate(head_outs, axis=-1).reshape(B * S, D)
    attn = jnp.dot(attn, wo_ref[...], preferred_element_type=jnp.float32) + bo

    # --- residual + LayerNorm 1 (dropout1 = identity at inference) ---
    y = attn + x2
    mu = jnp.mean(y, axis=-1, keepdims=True)
    var = jnp.mean((y - mu) ** 2, axis=-1, keepdims=True)
    y = (y - mu) * jax.lax.rsqrt(var + LN_EPS) * g1 + bt1

    # --- feed-forward: Linear -> ReLU -> Linear ---
    h1 = jnp.dot(y, w1_ref[...], preferred_element_type=jnp.float32) + b1
    h1 = jnp.maximum(h1, 0.0)
    ff = jnp.dot(h1, w2_ref[...], preferred_element_type=jnp.float32) + b2

    # --- residual + LayerNorm 2 (dropout2 = identity at inference) ---
    z = ff + y
    mu2 = jnp.mean(z, axis=-1, keepdims=True)
    var2 = jnp.mean((z - mu2) ** 2, axis=-1, keepdims=True)
    z = (z - mu2) * jax.lax.rsqrt(var2 + LN_EPS) * g2 + bt2

    o_ref[...] = z.reshape(B, S, D).astype(o_ref.dtype)


def _pack_vectors(params, d, ffn):
    """Pack the 10 small (1, n) vectors into one (8, 3d) slab -> single DMA."""
    width = max(3 * d, ffn, d)

    def pad(vrow):
        vrow = vrow.reshape(1, -1).astype(jnp.float32)
        return jnp.pad(vrow, ((0, 0), (0, width - vrow.shape[1])))

    bqkv = jnp.concatenate([params["bq"], params["bk"], params["bv"]], axis=-1)
    rows = [pad(bqkv), pad(params["bo"]), pad(params["g1"]), pad(params["bt1"]),
            pad(params["b1"]), pad(params["b2"]), pad(params["g2"]), pad(params["bt2"])]
    return jnp.concatenate(rows, axis=0)          # (8, width)


def memorizing_layer(x, params):
    B, S, D = x.shape
    # fuse Q/K/V weights into one (D, 3D) matrix; pack all small vectors into one slab
    wqkv = jnp.concatenate([params["wq"], params["wk"], params["wv"]], axis=1)
    vec = _pack_vectors(params, D, params["w1"].shape[1])
    wo, w1, w2 = params["wo"], params["w1"], params["w2"]

    def full_spec(shape):
        return pl.BlockSpec(shape, lambda i, _n=len(shape): (0,) * _n)

    in_specs = [
        full_spec((B, S, D)),       # x
        full_spec(wqkv.shape),      # fused QKV weight  (D, 3D)
        full_spec(wo.shape),        # output projection (D, D)
        full_spec(w1.shape),        # FFN weight 1      (D, FFN)
        full_spec(w2.shape),        # FFN weight 2      (FFN, D)
        full_spec(vec.shape),       # packed biases / LN params (8, 3D)
    ]
    out_spec = full_spec((B, S, D))

    return pl.pallas_call(
        memorizing_layer_kernel,
        out_shape=jax.ShapeDtypeStruct((B, S, D), x.dtype),
        grid_spec=pltpu.PrefetchScalarGridSpec(
            num_scalar_prefetch=0,
            grid=(1,),                      # whole problem in one kernel step
            in_specs=in_specs,
            out_specs=out_spec,
        ),
        compiler_params=pltpu.CompilerParams(dimension_semantics=("arbitrary",)),
    )(x, wqkv, wo, w1, w2, vec)


def init_params(key, d_model, ffn_hidden):
    ks = jax.random.split(key, 8)
    s_attn = 1.0 / math.sqrt(d_model)
    s_ffn1 = 1.0 / math.sqrt(d_model)
    s_ffn2 = 1.0 / math.sqrt(ffn_hidden)
    # NOTE: weights are stored (in, out); loading real torch nn.Linear weights requires .T
    return {
        "wq": jax.random.normal(ks[0], (d_model, d_model), jnp.float32) * s_attn,
        "wk": jax.random.normal(ks[1], (d_model, d_model), jnp.float32) * s_attn,
        "wv": jax.random.normal(ks[2], (d_model, d_model), jnp.float32) * s_attn,
        "wo": jax.random.normal(ks[3], (d_model, d_model), jnp.float32) * s_attn,
        "bq": jnp.zeros((1, d_model), jnp.float32),
        "bk": jnp.zeros((1, d_model), jnp.float32),
        "bv": jnp.zeros((1, d_model), jnp.float32),
        "bo": jnp.zeros((1, d_model), jnp.float32),
        "g1": jnp.ones((1, d_model), jnp.float32),
        "bt1": jnp.zeros((1, d_model), jnp.float32),
        "w1": jax.random.normal(ks[4], (d_model, ffn_hidden), jnp.float32) * s_ffn1,
        "b1": jnp.zeros((1, ffn_hidden), jnp.float32),
        "w2": jax.random.normal(ks[5], (ffn_hidden, d_model), jnp.float32) * s_ffn2,
        "b2": jnp.zeros((1, d_model), jnp.float32),
        "g2": jnp.ones((1, d_model), jnp.float32),
        "bt2": jnp.zeros((1, d_model), jnp.float32),
    }


def memorizing_layer_ref(x, params):
    """Pure-JAX reference (same math as the PyTorch module at inference)."""
    B, S, D = x.shape
    dh = D // N_HEAD
    x2 = x.reshape(B * S, D)
    q = (x2 @ params["wq"] + params["bq"]).reshape(B, S, N_HEAD, dh).transpose(0, 2, 1, 3)
    k = (x2 @ params["wk"] + params["bk"]).reshape(B, S, N_HEAD, dh).transpose(0, 2, 1, 3)
    v = (x2 @ params["wv"] + params["bv"]).reshape(B, S, N_HEAD, dh).transpose(0, 2, 1, 3)
    s = jnp.einsum('bhqd,bhkd->bhqk', q, k) / math.sqrt(dh)
    p = jax.nn.softmax(s, axis=-1)
    attn = jnp.einsum('bhqk,bhkd->bhqd', p, v).transpose(0, 2, 1, 3).reshape(B * S, D)
    attn = attn @ params["wo"] + params["bo"]
    y = attn + x2
    y = (y - y.mean(-1, keepdims=True)) / jnp.sqrt(y.var(-1, keepdims=True) + LN_EPS)
    y = y * params["g1"] + params["bt1"]
    h1 = jnp.maximum(y @ params["w1"] + params["b1"], 0.0)
    ff = h1 @ params["w2"] + params["b2"]
    z = ff + y
    z = (z - z.mean(-1, keepdims=True)) / jnp.sqrt(z.var(-1, keepdims=True) + LN_EPS)
    z = z * params["g2"] + params["bt2"]
    return z.reshape(B, S, D)


if __name__ == "__main__":
    key = jax.random.PRNGKey(0)
    k_x, k_p = jax.random.split(key)
    x = jax.random.normal(k_x, (BSZ, SEQ, D_MODEL), jnp.float32)
    params = init_params(k_p, D_MODEL, FFN_HIDDEN)

    out = memorizing_layer(x, params)
    jax.block_until_ready(out)
    assert out.shape == (BSZ, SEQ, D_MODEL)

    ref = memorizing_layer_ref(x, params)
    assert jnp.allclose(out, ref, atol=5e-2, rtol=5e-2), "kernel/reference mismatch"
    print("KERNEL_OK")
</pallas_src>

<mosaic_0001>
module attributes {stable_mosaic.version = 11 : i64} {
  func.func @memorizing_layer_kernel(%arg0: i32, %arg1: memref<2x8x32xf32, #tpu.memory_space<vmem>>, %arg2: memref<32x96xf32, #tpu.memory_space<vmem>>, %arg3: memref<32x32xf32, #tpu.memory_space<vmem>>, %arg4: memref<32x64xf32, #tpu.memory_space<vmem>>, %arg5: memref<64x32xf32, #tpu.memory_space<vmem>>, %arg6: memref<8x96xf32, #tpu.memory_space<vmem>>, %arg7: memref<2x8x32xf32, #tpu.memory_space<vmem>>) attributes {dimension_semantics = [#tpu.dimension_semantics<arbitrary>], iteration_bounds = array<i64: 1>, scalar_prefetch = 0 : i64, scratch_operands = 0 : i64, tpu.core_type = #tpu.core_type<tc>, window_params = [{pipeline_mode = #tpu.pipeline_mode<synchronous>, transform_indices = @transform_0, window_bounds = array<i64: 2, 8, 32>}, {pipeline_mode = #tpu.pipeline_mode<synchronous>, transform_indices = @transform_1, window_bounds = array<i64: 32, 96>}, {pipeline_mode = #tpu.pipeline_mode<synchronous>, transform_indices = @transform_2, window_bounds = array<i64: 32, 32>}, {pipeline_mode = #tpu.pipeline_mode<synchronous>, transform_indices = @transform_3, window_bounds = array<i64: 32, 64>}, {pipeline_mode = #tpu.pipeline_mode<synchronous>, transform_indices = @transform_4, window_bounds = array<i64: 64, 32>}, {pipeline_mode = #tpu.pipeline_mode<synchronous>, transform_indices = @transform_5, window_bounds = array<i64: 8, 96>}, {pipeline_mode = #tpu.pipeline_mode<synchronous>, transform_indices = @transform_6, window_bounds = array<i64: 2, 8, 32>}]} {
    %c0 = arith.constant 0 : index
    %c0_0 = arith.constant 0 : index
    %c0_1 = arith.constant 0 : index
    %0 = vector.load %arg1[%c0, %c0_0, %c0_1] : memref<2x8x32xf32, #tpu.memory_space<vmem>>, vector<2x8x32xf32>
    %1 = vector.shape_cast %0 : vector<2x8x32xf32> to vector<16x32xf32>
    %c0_2 = arith.constant 0 : index
    %c0_3 = arith.constant 0 : index
    %2 = vector.load %arg6[%c0_2, %c0_3] : memref<8x96xf32, #tpu.memory_space<vmem>>, vector<8x96xf32>
    %3 = vector.extract_strided_slice %2 {offsets = [0, 0], sizes = [1, 96], strides = [1, 1]} : vector<8x96xf32> to vector<1x96xf32>
    %4 = vector.extract_strided_slice %2 {offsets = [1, 0], sizes = [1, 32], strides = [1, 1]} : vector<8x96xf32> to vector<1x32xf32>
    %5 = vector.extract_strided_slice %2 {offsets = [2, 0], sizes = [1, 32], strides = [1, 1]} : vector<8x96xf32> to vector<1x32xf32>
    %6 = vector.extract_strided_slice %2 {offsets = [3, 0], sizes = [1, 32], strides = [1, 1]} : vector<8x96xf32> to vector<1x32xf32>
    %7 = vector.extract_strided_slice %2 {offsets = [4, 0], sizes = [1, 64], strides = [1, 1]} : vector<8x96xf32> to vector<1x64xf32>
    %8 = vector.extract_strided_slice %2 {offsets = [5, 0], sizes = [1, 32], strides = [1, 1]} : vector<8x96xf32> to vector<1x32xf32>
    %9 = vector.extract_strided_slice %2 {offsets = [6, 0], sizes = [1, 32], strides = [1, 1]} : vector<8x96xf32> to vector<1x32xf32>
    %10 = vector.extract_strided_slice %2 {offsets = [7, 0], sizes = [1, 32], strides = [1, 1]} : vector<8x96xf32> to vector<1x32xf32>
    %c0_4 = arith.constant 0 : index
    %c0_5 = arith.constant 0 : index
    %11 = vector.load %arg2[%c0_4, %c0_5] : memref<32x96xf32, #tpu.memory_space<vmem>>, vector<32x96xf32>
    %cst = arith.constant dense<0.000000e+00> : vector<16x96xf32>
    %12 = tpu.matmul %1, %11, %cst {dimension_numbers = #tpu.dot_dimension_numbers<[1], [0], [0], [1], [0, 0, 1, 1], [], []>} : vector<16x32xf32>, vector<32x96xf32>, vector<16x96xf32> -> vector<16x96xf32>
    %13 = vector.broadcast %3 : vector<1x96xf32> to vector<16x96xf32>
    %14 = arith.addf %12, %13 : vector<16x96xf32>
    %15 = vector.extract_strided_slice %14 {offsets = [0, 0], sizes = [16, 32], strides = [1, 1]} : vector<16x96xf32> to vector<16x32xf32>
    %16 = vector.shape_cast %15 : vector<16x32xf32> to vector<2x8x32xf32>
    %17 = vector.extract_strided_slice %14 {offsets = [0, 32], sizes = [16, 32], strides = [1, 1]} : vector<16x96xf32> to vector<16x32xf32>
    %18 = vector.shape_cast %17 : vector<16x32xf32> to vector<2x8x32xf32>
    %19 = vector.extract_strided_slice %14 {offsets = [0, 64], sizes = [16, 32], strides = [1, 1]} : vector<16x96xf32> to vector<16x32xf32>
    %20 = vector.shape_cast %19 : vector<16x32xf32> to vector<2x8x32xf32>
    %21 = vector.extract_strided_slice %16 {offsets = [0, 0, 0], sizes = [2, 8, 8], strides = [1, 1, 1]} : vector<2x8x32xf32> to vector<2x8x8xf32>
    %22 = vector.extract_strided_slice %18 {offsets = [0, 0, 0], sizes = [2, 8, 8], strides = [1, 1, 1]} : vector<2x8x32xf32> to vector<2x8x8xf32>
    "tpu.trace_start"() <{level = 10 : i32, message = "bqd,bkd->bqk"}> : () -> ()
    %cst_6 = arith.constant dense<0.000000e+00> : vector<2x8x8xf32>
    %23 = tpu.matmul %21, %22, %cst_6 {dimension_numbers = #tpu.dot_dimension_numbers<[2], [2], [1], [1], [0, 0, 0, 1, 1, 1], [0], [0]>} : vector<2x8x8xf32>, vector<2x8x8xf32>, vector<2x8x8xf32> -> vector<2x8x8xf32>
    "tpu.trace_stop"() : () -> ()
    %24 = vector.extract_strided_slice %16 {offsets = [0, 0, 8], sizes = [2, 8, 8], strides = [1, 1, 1]} : vector<2x8x32xf32> to vector<2x8x8xf32>
    %25 = vector.extract_strided_slice %18 {offsets = [0, 0, 8], sizes = [2, 8, 8], strides = [1, 1, 1]} : vector<2x8x32xf32> to vector<2x8x8xf32>
    "tpu.trace_start"() <{level = 10 : i32, message = "bqd,bkd->bqk"}> : () -> ()
    %cst_7 = arith.constant dense<0.000000e+00> : vector<2x8x8xf32>
    %26 = tpu.matmul %24, %25, %cst_7 {dimension_numbers = #tpu.dot_dimension_numbers<[2], [2], [1], [1], [0, 0, 0, 1, 1, 1], [0], [0]>} : vector<2x8x8xf32>, vector<2x8x8xf32>, vector<2x8x8xf32> -> vector<2x8x8xf32>
    "tpu.trace_stop"() : () -> ()
    %27 = vector.extract_strided_slice %16 {offsets = [0, 0, 16], sizes = [2, 8, 8], strides = [1, 1, 1]} : vector<2x8x32xf32> to vector<2x8x8xf32>
    %28 = vector.extract_strided_slice %18 {offsets = [0, 0, 16], sizes = [2, 8, 8], strides = [1, 1, 1]} : vector<2x8x32xf32> to vector<2x8x8xf32>
    "tpu.trace_start"() <{level = 10 : i32, message = "bqd,bkd->bqk"}> : () -> ()
    %cst_8 = arith.constant dense<0.000000e+00> : vector<2x8x8xf32>
    %29 = tpu.matmul %27, %28, %cst_8 {dimension_numbers = #tpu.dot_dimension_numbers<[2], [2], [1], [1], [0, 0, 0, 1, 1, 1], [0], [0]>} : vector<2x8x8xf32>, vector<2x8x8xf32>, vector<2x8x8xf32> -> vector<2x8x8xf32>
    "tpu.trace_stop"() : () -> ()
    %30 = vector.extract_strided_slice %16 {offsets = [0, 0, 24], sizes = [2, 8, 8], strides = [1, 1, 1]} : vector<2x8x32xf32> to vector<2x8x8xf32>
    %31 = vector.extract_strided_slice %18 {offsets = [0, 0, 24], sizes = [2, 8, 8], strides = [1, 1, 1]} : vector<2x8x32xf32> to vector<2x8x8xf32>
    "tpu.trace_start"() <{level = 10 : i32, message = "bqd,bkd->bqk"}> : () -> ()
    %cst_9 = arith.constant dense<0.000000e+00> : vector<2x8x8xf32>
    %32 = tpu.matmul %30, %31, %cst_9 {dimension_numbers = #tpu.dot_dimension_numbers<[2], [2], [1], [1], [0, 0, 0, 1, 1, 1], [0], [0]>} : vector<2x8x8xf32>, vector<2x8x8xf32>, vector<2x8x8xf32> -> vector<2x8x8xf32>
    "tpu.trace_stop"() : () -> ()
    %33 = vector.shape_cast %23 : vector<2x8x8xf32> to vector<1x2x8x8xf32>
    %34 = vector.shape_cast %26 : vector<2x8x8xf32> to vector<1x2x8x8xf32>
    %35 = vector.shape_cast %29 : vector<2x8x8xf32> to vector<1x2x8x8xf32>
    %36 = vector.shape_cast %32 : vector<2x8x8xf32> to vector<1x2x8x8xf32>
    %37 = tpu.concatenate %33, %34, %35, %36 in 0 : vector<1x2x8x8xf32>, vector<1x2x8x8xf32>, vector<1x2x8x8xf32>, vector<1x2x8x8xf32> -> vector<4x2x8x8xf32>
    %cst_10 = arith.constant 0.353553385 : f32
    %38 = vector.broadcast %cst_10 : f32 to vector<4x2x8x8xf32>
    %39 = arith.mulf %37, %38 : vector<4x2x8x8xf32>
    %cst_11 = arith.constant dense<0xFF800000> : vector<4x2x8xf32>
    %40 = vector.multi_reduction <maximumf>, %39, %cst_11 [3] : vector<4x2x8x8xf32> to vector<4x2x8xf32>
    %41 = vector.shape_cast %40 : vector<4x2x8xf32> to vector<4x2x8x1xf32>
    %42 = vector.broadcast %41 : vector<4x2x8x1xf32> to vector<4x2x8x8xf32>
    %43 = arith.subf %39, %42 : vector<4x2x8x8xf32>
    %44 = math.exp %43 : vector<4x2x8x8xf32>
    %cst_12 = arith.constant dense<0.000000e+00> : vector<4x2x8xf32>
    %45 = vector.multi_reduction <add>, %44, %cst_12 [3] : vector<4x2x8x8xf32> to vector<4x2x8xf32>
    %46 = vector.shape_cast %45 : vector<4x2x8xf32> to vector<4x2x8x1xf32>
    %47 = tpu.reciprocal %46 {approx = true} : vector<4x2x8x1xf32> -> vector<4x2x8x1xf32>
    %48 = vector.broadcast %47 : vector<4x2x8x1xf32> to vector<4x2x8x8xf32>
    %49 = arith.mulf %44, %48 : vector<4x2x8x8xf32>
    %50 = vector.extract_strided_slice %49 {offsets = [0, 0, 0, 0], sizes = [1, 2, 8, 8], strides = [1, 1, 1, 1]} : vector<4x2x8x8xf32> to vector<1x2x8x8xf32>
    %51 = vector.shape_cast %50 : vector<1x2x8x8xf32> to vector<2x8x8xf32>
    %52 = vector.extract_strided_slice %20 {offsets = [0, 0, 0], sizes = [2, 8, 8], strides = [1, 1, 1]} : vector<2x8x32xf32> to vector<2x8x8xf32>
    "tpu.trace_start"() <{level = 10 : i32, message = "bqk,bkd->bqd"}> : () -> ()
    %cst_13 = arith.constant dense<0.000000e+00> : vector<2x8x8xf32>
    %53 = tpu.matmul %51, %52, %cst_13 {dimension_numbers = #tpu.dot_dimension_numbers<[2], [1], [1], [2], [0, 0, 0, 1, 1, 2], [0], [0]>} : vector<2x8x8xf32>, vector<2x8x8xf32>, vector<2x8x8xf32> -> vector<2x8x8xf32>
    "tpu.trace_stop"() : () -> ()
    %54 = vector.extract_strided_slice %49 {offsets = [1, 0, 0, 0], sizes = [1, 2, 8, 8], strides = [1, 1, 1, 1]} : vector<4x2x8x8xf32> to vector<1x2x8x8xf32>
    %55 = vector.shape_cast %54 : vector<1x2x8x8xf32> to vector<2x8x8xf32>
    %56 = vector.extract_strided_slice %20 {offsets = [0, 0, 8], sizes = [2, 8, 8], strides = [1, 1, 1]} : vector<2x8x32xf32> to vector<2x8x8xf32>
    "tpu.trace_start"() <{level = 10 : i32, message = "bqk,bkd->bqd"}> : () -> ()
    %cst_14 = arith.constant dense<0.000000e+00> : vector<2x8x8xf32>
    %57 = tpu.matmul %55, %56, %cst_14 {dimension_numbers = #tpu.dot_dimension_numbers<[2], [1], [1], [2], [0, 0, 0, 1, 1, 2], [0], [0]>} : vector<2x8x8xf32>, vector<2x8x8xf32>, vector<2x8x8xf32> -> vector<2x8x8xf32>
    "tpu.trace_stop"() : () -> ()
    %58 = vector.extract_strided_slice %49 {offsets = [2, 0, 0, 0], sizes = [1, 2, 8, 8], strides = [1, 1, 1, 1]} : vector<4x2x8x8xf32> to vector<1x2x8x8xf32>
    %59 = vector.shape_cast %58 : vector<1x2x8x8xf32> to vector<2x8x8xf32>
    %60 = vector.extract_strided_slice %20 {offsets = [0, 0, 16], sizes = [2, 8, 8], strides = [1, 1, 1]} : vector<2x8x32xf32> to vector<2x8x8xf32>
    "tpu.trace_start"() <{level = 10 : i32, message = "bqk,bkd->bqd"}> : () -> ()
    %cst_15 = arith.constant dense<0.000000e+00> : vector<2x8x8xf32>
    %61 = tpu.matmul %59, %60, %cst_15 {dimension_numbers = #tpu.dot_dimension_numbers<[2], [1], [1], [2], [0, 0, 0, 1, 1, 2], [0], [0]>} : vector<2x8x8xf32>, vector<2x8x8xf32>, vector<2x8x8xf32> -> vector<2x8x8xf32>
    "tpu.trace_stop"() : () -> ()
    %62 = vector.extract_strided_slice %49 {offsets = [3, 0, 0, 0], sizes = [1, 2, 8, 8], strides = [1, 1, 1, 1]} : vector<4x2x8x8xf32> to vector<1x2x8x8xf32>
    %63 = vector.shape_cast %62 : vector<1x2x8x8xf32> to vector<2x8x8xf32>
    %64 = vector.extract_strided_slice %20 {offsets = [0, 0, 24], sizes = [2, 8, 8], strides = [1, 1, 1]} : vector<2x8x32xf32> to vector<2x8x8xf32>
    "tpu.trace_start"() <{level = 10 : i32, message = "bqk,bkd->bqd"}> : () -> ()
    %cst_16 = arith.constant dense<0.000000e+00> : vector<2x8x8xf32>
    %65 = tpu.matmul %63, %64, %cst_16 {dimension_numbers = #tpu.dot_dimension_numbers<[2], [1], [1], [2], [0, 0, 0, 1, 1, 2], [0], [0]>} : vector<2x8x8xf32>, vector<2x8x8xf32>, vector<2x8x8xf32> -> vector<2x8x8xf32>
    "tpu.trace_stop"() : () -> ()
    %66 = tpu.concatenate %53, %57, %61, %65 in 2 : vector<2x8x8xf32>, vector<2x8x8xf32>, vector<2x8x8xf32>, vector<2x8x8xf32> -> vector<2x8x32xf32>
    %67 = vector.shape_cast %66 : vector<2x8x32xf32> to vector<16x32xf32>
    %c0_17 = arith.constant 0 : index
    %c0_18 = arith.constant 0 : index
    %68 = vector.load %arg3[%c0_17, %c0_18] : memref<32x32xf32, #tpu.memory_space<vmem>>, vector<32x32xf32>
    %cst_19 = arith.constant dense<0.000000e+00> : vector<16x32xf32>
    %69 = tpu.matmul %67, %68, %cst_19 {dimension_numbers = #tpu.dot_dimension_numbers<[1], [0], [0], [1], [0, 0, 1, 1], [], []>} : vector<16x32xf32>, vector<32x32xf32>, vector<16x32xf32> -> vector<16x32xf32>
    %70 = vector.broadcast %4 : vector<1x32xf32> to vector<16x32xf32>
    %71 = arith.addf %69, %70 : vector<16x32xf32>
    %72 = arith.addf %71, %1 : vector<16x32xf32>
    %cst_20 = arith.constant dense<0.000000e+00> : vector<16xf32>
    %73 = vector.multi_reduction <add>, %72, %cst_20 [1] : vector<16x32xf32> to vector<16xf32>
    %74 = vector.shape_cast %73 : vector<16xf32> to vector<16x1xf32>
    %cst_21 = arith.constant 3.200000e+01 : f32
    %75 = vector.broadcast %cst_21 : f32 to vector<16x1xf32>
    %76 = arith.divf %74, %75 : vector<16x1xf32>
    %77 = vector.broadcast %76 : vector<16x1xf32> to vector<16x32xf32>
    %78 = arith.subf %72, %77 : vector<16x32xf32>
    %79 = arith.mulf %78, %78 : vector<16x32xf32>
    %cst_22 = arith.constant dense<0.000000e+00> : vector<16xf32>
    %80 = vector.multi_reduction <add>, %79, %cst_22 [1] : vector<16x32xf32> to vector<16xf32>
    %81 = vector.shape_cast %80 : vector<16xf32> to vector<16x1xf32>
    %cst_23 = arith.constant 3.200000e+01 : f32
    %82 = vector.broadcast %cst_23 : f32 to vector<16x1xf32>
    %83 = arith.divf %81, %82 : vector<16x1xf32>
    %84 = vector.broadcast %76 : vector<16x1xf32> to vector<16x32xf32>
    %85 = arith.subf %72, %84 : vector<16x32xf32>
    %cst_24 = arith.constant 9.99999974E-6 : f32
    %86 = vector.broadcast %cst_24 : f32 to vector<16x1xf32>
    %87 = arith.addf %83, %86 : vector<16x1xf32>
    %88 = math.rsqrt %87 : vector<16x1xf32>
    %89 = vector.broadcast %88 : vector<16x1xf32> to vector<16x32xf32>
    %90 = arith.mulf %85, %89 : vector<16x32xf32>
    %91 = vector.broadcast %5 : vector<1x32xf32> to vector<16x32xf32>
    %92 = arith.mulf %90, %91 : vector<16x32xf32>
    %93 = vector.broadcast %6 : vector<1x32xf32> to vector<16x32xf32>
    %94 = arith.addf %92, %93 : vector<16x32xf32>
    %c0_25 = arith.constant 0 : index
    %c0_26 = arith.constant 0 : index
    %95 = vector.load %arg4[%c0_25, %c0_26] : memref<32x64xf32, #tpu.memory_space<vmem>>, vector<32x64xf32>
    %cst_27 = arith.constant dense<0.000000e+00> : vector<16x64xf32>
    %96 = tpu.matmul %94, %95, %cst_27 {dimension_numbers = #tpu.dot_dimension_numbers<[1], [0], [0], [1], [0, 0, 1, 1], [], []>} : vector<16x32xf32>, vector<32x64xf32>, vector<16x64xf32> -> vector<16x64xf32>
    %97 = vector.broadcast %7 : vector<1x64xf32> to vector<16x64xf32>
    %98 = arith.addf %96, %97 : vector<16x64xf32>
    %cst_28 = arith.constant 0.000000e+00 : f32
    %99 = vector.broadcast %cst_28 : f32 to vector<16x64xf32>
    %100 = arith.maximumf %98, %99 : vector<16x64xf32>
    %c0_29 = arith.constant 0 : index
    %c0_30 = arith.constant 0 : index
    %101 = vector.load %arg5[%c0_29, %c0_30] : memref<64x32xf32, #tpu.memory_space<vmem>>, vector<64x32xf32>
    %cst_31 = arith.constant dense<0.000000e+00> : vector<16x32xf32>
    %102 = tpu.matmul %100, %101, %cst_31 {dimension_numbers = #tpu.dot_dimension_numbers<[1], [0], [0], [1], [0, 0, 1, 1], [], []>} : vector<16x64xf32>, vector<64x32xf32>, vector<16x32xf32> -> vector<16x32xf32>
    %103 = vector.broadcast %8 : vector<1x32xf32> to vector<16x32xf32>
    %104 = arith.addf %102, %103 : vector<16x32xf32>
    %105 = arith.addf %104, %94 : vector<16x32xf32>
    %cst_32 = arith.constant dense<0.000000e+00> : vector<16xf32>
    %106 = vector.multi_reduction <add>, %105, %cst_32 [1] : vector<16x32xf32> to vector<16xf32>
    %107 = vector.shape_cast %106 : vector<16xf32> to vector<16x1xf32>
    %cst_33 = arith.constant 3.200000e+01 : f32
    %108 = vector.broadcast %cst_33 : f32 to vector<16x1xf32>
    %109 = arith.divf %107, %108 : vector<16x1xf32>
    %110 = vector.broadcast %109 : vector<16x1xf32> to vector<16x32xf32>
    %111 = arith.subf %105, %110 : vector<16x32xf32>
    %112 = arith.mulf %111, %111 : vector<16x32xf32>
    %cst_34 = arith.constant dense<0.000000e+00> : vector<16xf32>
    %113 = vector.multi_reduction <add>, %112, %cst_34 [1] : vector<16x32xf32> to vector<16xf32>
    %114 = vector.shape_cast %113 : vector<16xf32> to vector<16x1xf32>
    %cst_35 = arith.constant 3.200000e+01 : f32
    %115 = vector.broadcast %cst_35 : f32 to vector<16x1xf32>
    %116 = arith.divf %114, %115 : vector<16x1xf32>
    %117 = vector.broadcast %109 : vector<16x1xf32> to vector<16x32xf32>
    %118 = arith.subf %105, %117 : vector<16x32xf32>
    %cst_36 = arith.constant 9.99999974E-6 : f32
    %119 = vector.broadcast %cst_36 : f32 to vector<16x1xf32>
    %120 = arith.addf %116, %119 : vector<16x1xf32>
    %121 = math.rsqrt %120 : vector<16x1xf32>
    %122 = vector.broadcast %121 : vector<16x1xf32> to vector<16x32xf32>
    %123 = arith.mulf %118, %122 : vector<16x32xf32>
    %124 = vector.broadcast %9 : vector<1x32xf32> to vector<16x32xf32>
    %125 = arith.mulf %123, %124 : vector<16x32xf32>
    %126 = vector.broadcast %10 : vector<1x32xf32> to vector<16x32xf32>
    %127 = arith.addf %125, %126 : vector<16x32xf32>
    %128 = vector.shape_cast %127 : vector<16x32xf32> to vector<2x8x32xf32>
    %c0_37 = arith.constant 0 : index
    %c0_38 = arith.constant 0 : index
    %c0_39 = arith.constant 0 : index
    %129 = vector.load %arg7[%c0_37, %c0_38, %c0_39] : memref<2x8x32xf32, #tpu.memory_space<vmem>>, vector<2x8x32xf32>
    tpu.vector_store %arg7[%c0_37, %c0_38, %c0_39], %128 {strides = array<i32>} : memref<2x8x32xf32, #tpu.memory_space<vmem>>, vector<2x8x32xf32>,
    return
  }
  func.func @transform_0(%arg0: i32) -> (i32, i32, i32) {
    %c0_i32 = arith.constant 0 : i32
    %c0_i32_0 = arith.constant 0 : i32
    %c0_i32_1 = arith.constant 0 : i32
    %c0_i32_2 = arith.constant 0 : i32
    return %c0_i32, %c0_i32_0, %c0_i32_1 : i32, i32, i32
  }
  func.func @transform_1(%arg0: i32) -> (i32, i32) {
    %c0_i32 = arith.constant 0 : i32
    %c0_i32_0 = arith.constant 0 : i32
    %c0_i32_1 = arith.constant 0 : i32
    return %c0_i32, %c0_i32_0 : i32, i32
  }
  func.func @transform_2(%arg0: i32) -> (i32, i32) {
    %c0_i32 = arith.constant 0 : i32
    %c0_i32_0 = arith.constant 0 : i32
    %c0_i32_1 = arith.constant 0 : i32
    return %c0_i32, %c0_i32_0 : i32, i32
  }
  func.func @transform_3(%arg0: i32) -> (i32, i32) {
    %c0_i32 = arith.constant 0 : i32
    %c0_i32_0 = arith.constant 0 : i32
    %c0_i32_1 = arith.constant 0 : i32
    return %c0_i32, %c0_i32_0 : i32, i32
  }
  func.func @transform_4(%arg0: i32) -> (i32, i32) {
    %c0_i32 = arith.constant 0 : i32
    %c0_i32_0 = arith.constant 0 : i32
    %c0_i32_1 = arith.constant 0 : i32
    return %c0_i32, %c0_i32_0 : i32, i32
  }
  func.func @transform_5(%arg0: i32) -> (i32, i32) {
    %c0_i32 = arith.constant 0 : i32
    %c0_i32_0 = arith.constant 0 : i32
    %c0_i32_1 = arith.constant 0 : i32
    return %c0_i32, %c0_i32_0 : i32, i32
  }
  func.func @transform_6(%arg0: i32) -> (i32, i32, i32) {
    %c0_i32 = arith.constant 0 : i32
    %c0_i32_0 = arith.constant 0 : i32
    %c0_i32_1 = arith.constant 0 : i32
    %c0_i32_2 = arith.constant 0 : i32
    return %c0_i32, %c0_i32_0, %c0_i32_1 : i32, i32, i32
  }
}

</mosaic_0001>

<llo_original>
// kernel: tpu_custom_call.1
$region0: #{tpu_custom_call.1}
  #allocation0 [shape = 'u32[]', space=smem, size = 0x4, offset = 0x4, fixed_abs, tag = 'smem constant byte address 0x4 - core index']
  #allocation1 [shape = 'u32[144,128]{1,0:T(1,128)}', space=vmem, size = 0x12000, scoped, tag = 'internal scratch']
  %s0 = inlined_call_operand.hbm [shape: f32[2,8,32], index: 0, kind: input, shape index: {}]
  %s1 = inlined_call_operand.vmem [shape: f32[32,96], index: 1, kind: input, shape index: {}]
  %s2 = inlined_call_operand.vmem [shape: f32[32,32], index: 2, kind: input, shape index: {}]
  %s3 = inlined_call_operand.vmem [shape: f32[32,64], index: 3, kind: input, shape index: {}]
  %s4 = inlined_call_operand.vmem [shape: f32[64,32], index: 4, kind: input, shape index: {}]
  %s5 = inlined_call_operand.vmem [shape: f32[8,96], index: 5, kind: input, shape index: {}]
  %s6 = inlined_call_operand.hbm [shape: f32[2,8,32], index: 6, kind: output, shape index: {}]
  %s7 = sld [smem:[#allocation0]]
  $region38: #{tpu_custom_call.1} parent=0
    _
  %s9 = ssub.s32 1, %s7
  %s10 = scalar_select 0, %s9, %s7
  $region1: #{tpu_custom_call.1} parent=0
    #allocation2 [shape = 'u8[8192]{0}', space=vmem, size = 0x2000, scoped, tag = 'input window, operand 0, single buffered']
    #allocation3 [shape = 's32[1]{0}', space=sflag, size = 0x4, scoped, tag = 'scoped memory for tpu_custom_call.1']
    #allocation4 [shape = 's32[1]{0}', space=sflag, size = 0x4, scoped, tag = 'scoped memory for tpu_custom_call.1']
    #allocation5 [shape = 'u8[8192]{0}', space=vmem, size = 0x2000, scoped, tag = 'output window, operand 0, single buffered']
    %11 = vsyncpa [#allocation3], 0
    %12 = vsyncpa [#allocation4], 0
    // Predicated region
    $region2: #{tpu_custom_call.1} parent=1 // pred_check
      _
    $region3: #{tpu_custom_call.1} parent=1 // pred_check_branch
      %14 = sbr.rel (0) target = $region5
    $region4: #{tpu_custom_call.1} parent=1 // pred_region
      %s16 = ssub.s32 256, 256
      %17 = vsyncadd [#allocation3], %s16
      %s18 = sshll.u32 [#allocation2], 4
      %s19 = int_to_ptr.vmem [resolvable:$true] %s18
      %24 = dma.hbm_to_vmem [thread:$0]  %s0, 256, %s19, [#allocation3], 128, 128, 8
    $region5: #{tpu_custom_call.1} parent=1 // pred_fallthru
      _
    // Predicated region
    $region6: #{tpu_custom_call.1} parent=1 // pred_check
      _
    $region7: #{tpu_custom_call.1} parent=1 // pred_check_branch
      %26 = sbr.rel (0) target = $region9
    $region8: #{tpu_custom_call.1} parent=1 // pred_region
      _
    $region9: #{tpu_custom_call.1} parent=1 // pred_fallthru
      _
    // Predicated region
    $region10: #{tpu_custom_call.1} parent=1 // pred_check
      _
    $region11: #{tpu_custom_call.1} parent=1 // pred_check_branch
      %28 = sbr.rel (0) target = $region13
    $region12: #{tpu_custom_call.1} parent=1 // pred_region
      _
    $region13: #{tpu_custom_call.1} parent=1 // pred_fallthru
      _
    // Predicated region
    $region14: #{tpu_custom_call.1} parent=1 // pred_check
      _
    $region15: #{tpu_custom_call.1} parent=1 // pred_check_branch
      %30 = sbr.rel (0) target = $region17
    $region16: #{tpu_custom_call.1} parent=1 // pred_region
      _
    $region17: #{tpu_custom_call.1} parent=1 // pred_fallthru
      _
    // Predicated region
    $region18: #{tpu_custom_call.1} parent=1 // pred_check
      _
    $region19: #{tpu_custom_call.1} parent=1 // pred_check_branch
      %32 = sbr.rel (0) target = $region21
    $region20: #{tpu_custom_call.1} parent=1 // pred_region
      _
    $region21: #{tpu_custom_call.1} parent=1 // pred_fallthru
      _
    // Predicated region
    $region22: #{tpu_custom_call.1} parent=1 // pred_check
      _
    $region23: #{tpu_custom_call.1} parent=1 // pred_check_branch
      %34 = sbr.rel (0) target = $region25
    $region24: #{tpu_custom_call.1} parent=1 // pred_region
      _
    $region25: #{tpu_custom_call.1} parent=1 // pred_fallthru
      _
    // Predicated region
    $region26: #{tpu_custom_call.1} parent=1 // pred_check
      _
    $region27: #{tpu_custom_call.1} parent=1 // pred_check_branch
      %36 = sbr.rel (0) target = $region29
    $region28: #{tpu_custom_call.1} parent=1 // pred_region
      %37 = dma.done [#allocation3], 256
    $region29: #{tpu_custom_call.1} parent=1 // pred_fallthru
      _
    %v38 = vld [vmem:[#allocation2] sm:$0xff]
    %v39 = vld [vmem:[#allocation2 + $0x8] sm:$0xff]
    %v40 = vld [vmem:[%s5] sm:$0xff]
    %v41 = vld [vmem:[%s1] sm:$0xff]
    %v42 = vld [vmem:[%s1 + $0x8] sm:$0xff]
    %v43 = vld [vmem:[%s1 + $0x10] sm:$0xff]
    %v44 = vld [vmem:[%s1 + $0x18] sm:$0xff]
    %v45 = vlaneseq
    %v46 = vshrl.u32 %v45, 7
    %v47 = vsub.s32 0, %v46
    %v48 = vrot.slane %v40, %v47
    %vm49 = vcmask 261120
    %v51 = vsel %vm49, %v38, 0
    %v54 = vsel %vm49, %v39, 0
    %56 = vmatprep.subr.mxu0 0.0
    %57 = vmatpush1.msra.mxu0 %v41
    %58 = vmatprep.subr.mxu0 0.0
    %59 = vmatpush1.msra.mxu0 %v42
    %60 = vmatprep.subr.mxu0 0.0
    %61 = vmatpush1.msra.mxu0 %v43
    %62 = vmatprep.subr.mxu0 0.0
    %63 = vmatpush1.msra.mxu0 %v44
    %64 = vmatprep.subr.mxu0 0.0
    %65 = vmatpush1.msra.mxu0 0.0
    %66 = vmatprep.subr.mxu0 0.0
    %67 = vmatpush1.msra.mxu0 0.0
    %68 = vmatprep.subr.mxu0 0.0
    %69 = vmatpush1.msra.mxu0 0.0
    %70 = vmatprep.subr.mxu0 0.0
    %71 = vmatpush1.msra.mxu0 0.0
    %72 = vmatprep.subr.mxu0 0.0
    %73 = vmatpush1.msra.mxu0 0.0
    %74 = vmatprep.subr.mxu0 0.0
    %75 = vmatpush1.msra.mxu0 0.0
    %76 = vmatprep.subr.mxu0 0.0
    %77 = vmatpush1.msra.mxu0 0.0
    %78 = vmatprep.subr.mxu0 0.0
    %79 = vmatpush1.msra.mxu0 0.0
    %80 = vmatprep.subr.mxu0 0.0
    %81 = vmatpush1.msra.mxu0 0.0
    %82 = vmatprep.subr.mxu0 0.0
    %83 = vmatpush1.msra.mxu0 0.0
    %84 = vmatprep.subr.mxu0 0.0
    %85 = vmatpush1.msra.mxu0 0.0
    %86 = vmatprep.subr.mxu0 0.0
    %87 = vmatpush1.msra.mxu0 0.0
    %88 = vmatprep.subr.mxu0 0.0
    %89 = vmatpush1.msra.mxu0 0.0
    %90 = vmatprep.subr.mxu0 0.0
    %91 = vmatpush1.msra.mxu0 0.0
    %92 = vmatprep.subr.mxu0 0.0
    %93 = vmatpush1.msra.mxu0 0.0
    %94 = vmatprep.subr.mxu0 0.0
    %95 = vmatpush1.msra.mxu0 0.0
    %96 = vmatprep.subr.mxu0 0.0
    %97 = vmatpush1.msra.mxu0 0.0
    %98 = vmatprep.subr.mxu0 0.0
    %99 = vmatpush1.msra.mxu0 0.0
    %100 = vmatprep.subr.mxu0 0.0
    %101 = vmatpush1.msra.mxu0 0.0
    %102 = vmatprep.subr.mxu0 0.0
    %103 = vmatpush1.msra.mxu0 0.0
    %104 = vmatprep.subr.mxu0 0.0
    %105 = vmatpush1.msra.mxu0 0.0
    %106 = vmatprep.subr.mxu0 0.0
    %107 = vmatpush1.msra.mxu0 0.0
    %108 = vmatprep.subr.mxu0 0.0
    %109 = vmatpush1.msra.mxu0 0.0
    %110 = vmatprep.subr.mxu0 0.0
    %111 = vmatpush1.msra.mxu0 0.0
    %112 = vmatprep.subr.mxu0 0.0
    %113 = vmatpush1.msra.mxu0 0.0
    %114 = vmatprep.subr.mxu0 0.0
    %115 = vmatpush1.msra.mxu0 0.0
    %116 = vmatprep.subr.mxu0 0.0
    %117 = vmatpush1.msra.mxu0 0.0
    %118 = vmatprep.subr.mxu0 0.0
    %119 = vmatpush1.msra.mxu0 0.0
    %120 = vmatprep.mubr.f32.mxu0 0.0
    %121 = vmatmul.mubr.f32.gmra.mrb[0].mxu0 %v51
    %v122 = vpop.f32.mrb[0].mxu0
    %v123 = vadd.f32 %v48, %v122
    %v124 = vpop.f32.mrb[0].mxu0
    %125 = vmatprep.mubr.f32.mxu0 0.0
    %126 = vmatmul.mubr.f32.gmra.mrb[0].mxu0 %v54
    %v127 = vpop.f32.mrb[0].mxu0
    %v128 = vadd.f32 %v48, %v127
    %v129 = vpop.f32.mrb[0].mxu0
    %130 = vdwg.mxu0
    %132 = vrot.lane.b32.xlu0 %v123, 96
    %v133 = vpop.permute.xlu0 %132
    %vm134 = vcmask 64512
    %v135 = vsel %vm134, %v123, 0
    %v137 = vsel %vm134, %v133, 0
    %139 = vmatprep.subr.mxu0 0.0
    %140 = vmatpush1.xpose.msra.mxu0 %v137
    %141 = vmatprep.subr.mxu0 0.0
    %142 = vmatpush1.xpose.msra.mxu0 0.0
    %143 = vmatprep.subr.mxu0 0.0
    %144 = vmatpush1.xpose.msra.mxu0 0.0
    %145 = vmatprep.subr.mxu0 0.0
    %146 = vmatpush1.xpose.msra.mxu0 0.0
    %147 = vmatprep.subr.mxu0 0.0
    %148 = vmatpush1.xpose.msra.mxu0 0.0
    %149 = vmatprep.subr.mxu0 0.0
    %150 = vmatpush1.xpose.msra.mxu0 0.0
    %151 = vmatprep.subr.mxu0 0.0
    %152 = vmatpush1.xpose.msra.mxu0 0.0
    %153 = vmatprep.subr.mxu0 0.0
    %154 = vmatpush1.xpose.msra.mxu0 0.0
    %155 = vmatprep.subr.mxu0 0.0
    %156 = vmatpush1.xpose.msra.mxu0 0.0
    %157 = vmatprep.subr.mxu0 0.0
    %158 = vmatpush1.xpose.msra.mxu0 0.0
    %159 = vmatprep.subr.mxu0 0.0
    %160 = vmatpush1.xpose.msra.mxu0 0.0
    %161 = vmatprep.subr.mxu0 0.0
    %162 = vmatpush1.xpose.msra.mxu0 0.0
    %163 = vmatprep.subr.mxu0 0.0
    %164 = vmatpush1.xpose.msra.mxu0 0.0
    %165 = vmatprep.subr.mxu0 0.0
    %166 = vmatpush1.xpose.msra.mxu0 0.0
    %167 = vmatprep.subr.mxu0 0.0
    %168 = vmatpush1.xpose.msra.mxu0 0.0
    %169 = vmatprep.subr.mxu0 0.0
    %170 = vmatpush1.xpose.msra.mxu0 0.0
    %171 = vmatprep.subr.mxu0 0.0
    %172 = vmatpush1.xpose.msra.mxu0 0.0
    %173 = vmatprep.subr.mxu0 0.0
    %174 = vmatpush1.xpose.msra.mxu0 0.0
    %175 = vmatprep.subr.mxu0 0.0
    %176 = vmatpush1.xpose.msra.mxu0 0.0
    %177 = vmatprep.subr.mxu0 0.0
    %178 = vmatpush1.xpose.msra.mxu0 0.0
    %179 = vmatprep.subr.mxu0 0.0
    %180 = vmatpush1.xpose.msra.mxu0 0.0
    %181 = vmatprep.subr.mxu0 0.0
    %182 = vmatpush1.xpose.msra.mxu0 0.0
    %183 = vmatprep.subr.mxu0 0.0
    %184 = vmatpush1.xpose.msra.mxu0 0.0
    %185 = vmatprep.subr.mxu0 0.0
    %186 = vmatpush1.xpose.msra.mxu0 0.0
    %187 = vmatprep.subr.mxu0 0.0
    %188 = vmatpush1.xpose.msra.mxu0 0.0
    %189 = vmatprep.subr.mxu0 0.0
    %190 = vmatpush1.xpose.msra.mxu0 0.0
    %191 = vmatprep.subr.mxu0 0.0
    %192 = vmatpush1.xpose.msra.mxu0 0.0
    %193 = vmatprep.subr.mxu0 0.0
    %194 = vmatpush1.xpose.msra.mxu0 0.0
    %195 = vmatprep.subr.mxu0 0.0
    %196 = vmatpush1.xpose.msra.mxu0 0.0
    %197 = vmatprep.subr.mxu0 0.0
    %198 = vmatpush1.xpose.msra.mxu0 0.0
    %199 = vmatprep.subr.mxu0 0.0
    %200 = vmatpush1.xpose.msra.mxu0 0.0
    %201 = vmatprep.subr.mxu0 0.0
    %202 = vmatpush1.xpose.msra.mxu0 0.0
    %203 = vmatprep.mubr.f32.mxu0 0.0
    %204 = vmatmul.mubr.f32.gmra.mrb[0].mxu0 %v135
    %v205 = vpop.f32.mrb[0].mxu0
    %v206 = vadd.f32 0.0, %v205
    %v207 = vpop.f32.mrb[0].mxu0
    %208 = vdwg.mxu0
    %210 = vrot.lane.b32.xlu0 %v128, 96
    %v211 = vpop.permute.xlu0 %210
    %v212 = vsel %vm134, %v128, 0
    %v214 = vsel %vm134, %v211, 0
    %216 = vmatprep.subr.mxu0 0.0
    %217 = vmatpush1.xpose.msra.mxu0 %v214
    %218 = vmatprep.subr.mxu0 0.0
    %219 = vmatpush1.xpose.msra.mxu0 0.0
    %220 = vmatprep.subr.mxu0 0.0
    %221 = vmatpush1.xpose.msra.mxu0 0.0
    %222 = vmatprep.subr.mxu0 0.0
    %223 = vmatpush1.xpose.msra.mxu0 0.0
    %224 = vmatprep.subr.mxu0 0.0
    %225 = vmatpush1.xpose.msra.mxu0 0.0
    %226 = vmatprep.subr.mxu0 0.0
    %227 = vmatpush1.xpose.msra.mxu0 0.0
    %228 = vmatprep.subr.mxu0 0.0
    %229 = vmatpush1.xpose.msra.mxu0 0.0
    %230 = vmatprep.subr.mxu0 0.0
    %231 = vmatpush1.xpose.msra.mxu0 0.0
    %232 = vmatprep.subr.mxu0 0.0
    %233 = vmatpush1.xpose.msra.mxu0 0.0
    %234 = vmatprep.subr.mxu0 0.0
    %235 = vmatpush1.xpose.msra.mxu0 0.0
    %236 = vmatprep.subr.mxu0 0.0
    %237 = vmatpush1.xpose.msra.mxu0 0.0
    %238 = vmatprep.subr.mxu0 0.0
    %239 = vmatpush1.xpose.msra.mxu0 0.0
    %240 = vmatprep.subr.mxu0 0.0
    %241 = vmatpush1.xpose.msra.mxu0 0.0
    %242 = vmatprep.subr.mxu0 0.0
    %243 = vmatpush1.xpose.msra.mxu0 0.0
    %244 = vmatprep.subr.mxu0 0.0
    %245 = vmatpush1.xpose.msra.mxu0 0.0
    %246 = vmatprep.subr.mxu0 0.0
    %247 = vmatpush1.xpose.msra.mxu0 0.0
    %248 = vmatprep.subr.mxu0 0.0
    %249 = vmatpush1.xpose.msra.mxu0 0.0
    %250 = vmatprep.subr.mxu0 0.0
    %251 = vmatpush1.xpose.msra.mxu0 0.0
    %252 = vmatprep.subr.mxu0 0.0
    %253 = vmatpush1.xpose.msra.mxu0 0.0
    %254 = vmatprep.subr.mxu0 0.0
    %255 = vmatpush1.xpose.msra.mxu0 0.0
    %256 = vmatprep.subr.mxu0 0.0
    %257 = vmatpush1.xpose.msra.mxu0 0.0
    %258 = vmatprep.subr.mxu0 0.0
    %259 = vmatpush1.xpose.msra.mxu0 0.0
    %260 = vmatprep.subr.mxu0 0.0
    %261 = vmatpush1.xpose.msra.mxu0 0.0
    %262 = vmatprep.subr.mxu0 0.0
    %263 = vmatpush1.xpose.msra.mxu0 0.0
    %264 = vmatprep.subr.mxu0 0.0
    %265 = vmatpush1.xpose.msra.mxu0 0.0
    %266 = vmatprep.subr.mxu0 0.0
    %267 = vmatpush1.xpose.msra.mxu0 0.0
    %268 = vmatprep.subr.mxu0 0.0
    %269 = vmatpush1.xpose.msra.mxu0 0.0
    %270 = vmatprep.subr.mxu0 0.0
    %271 = vmatpush1.xpose.msra.mxu0 0.0
    %272 = vmatprep.subr.mxu0 0.0
    %273 = vmatpush1.xpose.msra.mxu0 0.0
    %274 = vmatprep.subr.mxu0 0.0
    %275 = vmatpush1.xpose.msra.mxu0 0.0
    %276 = vmatprep.subr.mxu0 0.0
    %277 = vmatpush1.xpose.msra.mxu0 0.0
    %278 = vmatprep.subr.mxu0 0.0
    %279 = vmatpush1.xpose.msra.mxu0 0.0
    %280 = vmatprep.mubr.f32.mxu0 0.0
    %281 = vmatmul.mubr.f32.gmra.mrb[0].mxu0 %v212
    %v282 = vpop.f32.mrb[0].mxu0
    %v283 = vadd.f32 0.0, %v282
    %v284 = vpop.f32.mrb[0].mxu0
    %285 = vdwg.mxu0
    %286 = vrot.lane.b32.xlu0 %v123, 120
    %v287 = vpop.permute.xlu0 %286
    %288 = vrot.lane.b32.xlu0 %v123, 88
    %v289 = vpop.permute.xlu0 %288
    %v290 = vsel %vm134, %v287, 0
    %v292 = vsel %vm134, %v289, 0
    %294 = vmatprep.subr.mxu0 0.0
    %295 = vmatpush1.xpose.msra.mxu0 %v292
    %296 = vmatprep.subr.mxu0 0.0
    %297 = vmatpush1.xpose.msra.mxu0 0.0
    %298 = vmatprep.subr.mxu0 0.0
    %299 = vmatpush1.xpose.msra.mxu0 0.0
    %300 = vmatprep.subr.mxu0 0.0
    %301 = vmatpush1.xpose.msra.mxu0 0.0
    %302 = vmatprep.subr.mxu0 0.0
    %303 = vmatpush1.xpose.msra.mxu0 0.0
    %304 = vmatprep.subr.mxu0 0.0
    %305 = vmatpush1.xpose.msra.mxu0 0.0
    %306 = vmatprep.subr.mxu0 0.0
    %307 = vmatpush1.xpose.msra.mxu0 0.0
    %308 = vmatprep.subr.mxu0 0.0
    %309 = vmatpush1.xpose.msra.mxu0 0.0
    %310 = vmatprep.subr.mxu0 0.0
    %311 = vmatpush1.xpose.msra.mxu0 0.0
    %312 = vmatprep.subr.mxu0 0.0
    %313 = vmatpush1.xpose.msra.mxu0 0.0
    %314 = vmatprep.subr.mxu0 0.0
    %315 = vmatpush1.xpose.msra.mxu0 0.0
    %316 = vmatprep.subr.mxu0 0.0
    %317 = vmatpush1.xpose.msra.mxu0 0.0
    %318 = vmatprep.subr.mxu0 0.0
    %319 = vmatpush1.xpose.msra.mxu0 0.0
    %320 = vmatprep.subr.mxu0 0.0
    %321 = vmatpush1.xpose.msra.mxu0 0.0
    %322 = vmatprep.subr.mxu0 0.0
    %323 = vmatpush1.xpose.msra.mxu0 0.0
    %324 = vmatprep.subr.mxu0 0.0
    %325 = vmatpush1.xpose.msra.mxu0 0.0
    %326 = vmatprep.subr.mxu0 0.0
    %327 = vmatpush1.xpose.msra.mxu0 0.0
    %328 = vmatprep.subr.mxu0 0.0
    %329 = vmatpush1.xpose.msra.mxu0 0.0
    %330 = vmatprep.subr.mxu0 0.0
    %331 = vmatpush1.xpose.msra.mxu0 0.0
    %332 = vmatprep.subr.mxu0 0.0
    %333 = vmatpush1.xpose.msra.mxu0 0.0
    %334 = vmatprep.subr.mxu0 0.0
    %335 = vmatpush1.xpose.msra.mxu0 0.0
    %336 = vmatprep.subr.mxu0 0.0
    %337 = vmatpush1.xpose.msra.mxu0 0.0
    %338 = vmatprep.subr.mxu0 0.0
    %339 = vmatpush1.xpose.msra.mxu0 0.0
    %340 = vmatprep.subr.mxu0 0.0
    %341 = vmatpush1.xpose.msra.mxu0 0.0
    %342 = vmatprep.subr.mxu0 0.0
    %343 = vmatpush1.xpose.msra.mxu0 0.0
    %344 = vmatprep.subr.mxu0 0.0
    %345 = vmatpush1.xpose.msra.mxu0 0.0
    %346 = vmatprep.subr.mxu0 0.0
    %347 = vmatpush1.xpose.msra.mxu0 0.0
    %348 = vmatprep.subr.mxu0 0.0
    %349 = vmatpush1.xpose.msra.mxu0 0.0
    %350 = vmatprep.subr.mxu0 0.0
    %351 = vmatpush1.xpose.msra.mxu0 0.0
    %352 = vmatprep.subr.mxu0 0.0
    %353 = vmatpush1.xpose.msra.mxu0 0.0
    %354 = vmatprep.subr.mxu0 0.0
    %355 = vmatpush1.xpose.msra.mxu0 0.0
    %356 = vmatprep.subr.mxu0 0.0
    %357 = vmatpush1.xpose.msra.mxu0 0.0
    %358 = vmatprep.mubr.f32.mxu0 0.0
    %359 = vmatmul.mubr.f32.gmra.mrb[0].mxu0 %v290
    %v360 = vpop.f32.mrb[0].mxu0
    %v361 = vadd.f32 0.0, %v360
    %v362 = vpop.f32.mrb[0].mxu0
    %363 = vdwg.mxu0
    %364 = vrot.lane.b32.xlu0 %v128, 120
    %v365 = vpop.permute.xlu0 %364
    %366 = vrot.lane.b32.xlu0 %v128, 88
    %v367 = vpop.permute.xlu0 %366
    %v368 = vsel %vm134, %v365, 0
    %v370 = vsel %vm134, %v367, 0
    %372 = vmatprep.subr.mxu0 0.0
    %373 = vmatpush1.xpose.msra.mxu0 %v370
    %374 = vmatprep.subr.mxu0 0.0
    %375 = vmatpush1.xpose.msra.mxu0 0.0
    %376 = vmatprep.subr.mxu0 0.0
    %377 = vmatpush1.xpose.msra.mxu0 0.0
    %378 = vmatprep.subr.mxu0 0.0
    %379 = vmatpush1.xpose.msra.mxu0 0.0
    %380 = vmatprep.subr.mxu0 0.0
    %381 = vmatpush1.xpose.msra.mxu0 0.0
    %382 = vmatprep.subr.mxu0 0.0
    %383 = vmatpush1.xpose.msra.mxu0 0.0
    %384 = vmatprep.subr.mxu0 0.0
    %385 = vmatpush1.xpose.msra.mxu0 0.0
    %386 = vmatprep.subr.mxu0 0.0
    %387 = vmatpush1.xpose.msra.mxu0 0.0
    %388 = vmatprep.subr.mxu0 0.0
    %389 = vmatpush1.xpose.msra.mxu0 0.0
    %390 = vmatprep.subr.mxu0 0.0
    %391 = vmatpush1.xpose.msra.mxu0 0.0
    %392 = vmatprep.subr.mxu0 0.0
    %393 = vmatpush1.xpose.msra.mxu0 0.0
    %394 = vmatprep.subr.mxu0 0.0
    %395 = vmatpush1.xpose.msra.mxu0 0.0
    %396 = vmatprep.subr.mxu0 0.0
    %397 = vmatpush1.xpose.msra.mxu0 0.0
    %398 = vmatprep.subr.mxu0 0.0
    %399 = vmatpush1.xpose.msra.mxu0 0.0
    %400 = vmatprep.subr.mxu0 0.0
    %401 = vmatpush1.xpose.msra.mxu0 0.0
    %402 = vmatprep.subr.mxu0 0.0
    %403 = vmatpush1.xpose.msra.mxu0 0.0
    %404 = vmatprep.subr.mxu0 0.0
    %405 = vmatpush1.xpose.msra.mxu0 0.0
    %406 = vmatprep.subr.mxu0 0.0
    %407 = vmatpush1.xpose.msra.mxu0 0.0
    %408 = vmatprep.subr.mxu0 0.0
    %409 = vmatpush1.xpose.msra.mxu0 0.0
    %410 = vmatprep.subr.mxu0 0.0
    %411 = vmatpush1.xpose.msra.mxu0 0.0
    %412 = vmatprep.subr.mxu0 0.0
    %413 = vmatpush1.xpose.msra.mxu0 0.0
    %414 = vmatprep.subr.mxu0 0.0
    %415 = vmatpush1.xpose.msra.mxu0 0.0
    %416 = vmatprep.subr.mxu0 0.0
    %417 = vmatpush1.xpose.msra.mxu0 0.0
    %418 = vmatprep.subr.mxu0 0.0
    %419 = vmatpush1.xpose.msra.mxu0 0.0
    %420 = vmatprep.subr.mxu0 0.0
    %421 = vmatpush1.xpose.msra.mxu0 0.0
    %422 = vmatprep.subr.mxu0 0.0
    %423 = vmatpush1.xpose.msra.mxu0 0.0
    %424 = vmatprep.subr.mxu0 0.0
    %425 = vmatpush1.xpose.msra.mxu0 0.0
    %426 = vmatprep.subr.mxu0 0.0
    %427 = vmatpush1.xpose.msra.mxu0 0.0
    %428 = vmatprep.subr.mxu0 0.0
    %429 = vmatpush1.xpose.msra.mxu0 0.0
    %430 = vmatprep.subr.mxu0 0.0
    %431 = vmatpush1.xpose.msra.mxu0 0.0
    %432 = vmatprep.subr.mxu0 0.0
    %433 = vmatpush1.xpose.msra.mxu0 0.0
    %434 = vmatprep.subr.mxu0 0.0
    %435 = vmatpush1.xpose.msra.mxu0 0.0
    %436 = vmatprep.mubr.f32.mxu0 0.0
    %437 = vmatmul.mubr.f32.gmra.mrb[0].mxu0 %v368
    %v438 = vpop.f32.mrb[0].mxu0
    %v439 = vadd.f32 0.0, %v438
    %v440 = vpop.f32.mrb[0].mxu0
    %441 = vdwg.mxu0
    %442 = vrot.lane.b32.xlu0 %v123, 112
    %v443 = vpop.permute.xlu0 %442
    %444 = vrot.lane.b32.xlu0 %v123, 80
    %v445 = vpop.permute.xlu0 %444
    %v446 = vsel %vm134, %v443, 0
    %v448 = vsel %vm134, %v445, 0
    %450 = vmatprep.subr.mxu0 0.0
    %451 = vmatpush1.xpose.msra.mxu0 %v448
    %452 = vmatprep.subr.mxu0 0.0
    %453 = vmatpush1.xpose.msra.mxu0 0.0
    %454 = vmatprep.subr.mxu0 0.0
    %455 = vmatpush1.xpose.msra.mxu0 0.0
    %456 = vmatprep.subr.mxu0 0.0
    %457 = vmatpush1.xpose.msra.mxu0 0.0
    %458 = vmatprep.subr.mxu0 0.0
    %459 = vmatpush1.xpose.msra.mxu0 0.0
    %460 = vmatprep.subr.mxu0 0.0
    %461 = vmatpush1.xpose.msra.mxu0 0.0
    %462 = vmatprep.subr.mxu0 0.0
    %463 = vmatpush1.xpose.msra.mxu0 0.0
    %464 = vmatprep.subr.mxu0 0.0
    %465 = vmatpush1.xpose.msra.mxu0 0.0
    %466 = vmatprep.subr.mxu0 0.0
    %467 = vmatpush1.xpose.msra.mxu0 0.0
    %468 = vmatprep.subr.mxu0 0.0
    %469 = vmatpush1.xpose.msra.mxu0 0.0
    %470 = vmatprep.subr.mxu0 0.0
    %471 = vmatpush1.xpose.msra.mxu0 0.0
    %472 = vmatprep.subr.mxu0 0.0
    %473 = vmatpush1.xpose.msra.mxu0 0.0
    %474 = vmatprep.subr.mxu0 0.0
    %475 = vmatpush1.xpose.msra.mxu0 0.0
    %476 = vmatprep.subr.mxu0 0.0
    %477 = vmatpush1.xpose.msra.mxu0 0.0
    %478 = vmatprep.subr.mxu0 0.0
    %479 = vmatpush1.xpose.msra.mxu0 0.0
    %480 = vmatprep.subr.mxu0 0.0
    %481 = vmatpush1.xpose.msra.mxu0 0.0
    %482 = vmatprep.subr.mxu0 0.0
    %483 = vmatpush1.xpose.msra.mxu0 0.0
    %484 = vmatprep.subr.mxu0 0.0
    %485 = vmatpush1.xpose.msra.mxu0 0.0
    %486 = vmatprep.subr.mxu0 0.0
    %487 = vmatpush1.xpose.msra.mxu0 0.0
    %488 = vmatprep.subr.mxu0 0.0
    %489 = vmatpush1.xpose.msra.mxu0 0.0
    %490 = vmatprep.subr.mxu0 0.0
    %491 = vmatpush1.xpose.msra.mxu0 0.0
    %492 = vmatprep.subr.mxu0 0.0
    %493 = vmatpush1.xpose.msra.mxu0 0.0
    %494 = vmatprep.subr.mxu0 0.0
    %495 = vmatpush1.xpose.msra.mxu0 0.0
    %496 = vmatprep.subr.mxu0 0.0
    %497 = vmatpush1.xpose.msra.mxu0 0.0
    %498 = vmatprep.subr.mxu0 0.0
    %499 = vmatpush1.xpose.msra.mxu0 0.0
    %500 = vmatprep.subr.mxu0 0.0
    %501 = vmatpush1.xpose.msra.mxu0 0.0
    %502 = vmatprep.subr.mxu0 0.0
    %503 = vmatpush1.xpose.msra.mxu0 0.0
    %504 = vmatprep.subr.mxu0 0.0
    %505 = vmatpush1.xpose.msra.mxu0 0.0
    %506 = vmatprep.subr.mxu0 0.0
    %507 = vmatpush1.xpose.msra.mxu0 0.0
    %508 = vmatprep.subr.mxu0 0.0
    %509 = vmatpush1.xpose.msra.mxu0 0.0
    %510 = vmatprep.subr.mxu0 0.0
    %511 = vmatpush1.xpose.msra.mxu0 0.0
    %512 = vmatprep.subr.mxu0 0.0
    %513 = vmatpush1.xpose.msra.mxu0 0.0
    %514 = vmatprep.mubr.f32.mxu0 0.0
    %515 = vmatmul.mubr.f32.gmra.mrb[0].mxu0 %v446
    %v516 = vpop.f32.mrb[0].mxu0
    %v517 = vadd.f32 0.0, %v516
    %v518 = vpop.f32.mrb[0].mxu0
    %519 = vdwg.mxu0
    %520 = vrot.lane.b32.xlu0 %v128, 112
    %v521 = vpop.permute.xlu0 %520
    %522 = vrot.lane.b32.xlu0 %v128, 80
    %v523 = vpop.permute.xlu0 %522
    %v524 = vsel %vm134, %v521, 0
    %v526 = vsel %vm134, %v523, 0
    %528 = vmatprep.subr.mxu0 0.0
    %529 = vmatpush1.xpose.msra.mxu0 %v526
    %530 = vmatprep.subr.mxu0 0.0
    %531 = vmatpush1.xpose.msra.mxu0 0.0
    %532 = vmatprep.subr.mxu0 0.0
    %533 = vmatpush1.xpose.msra.mxu0 0.0
    %534 = vmatprep.subr.mxu0 0.0
    %535 = vmatpush1.xpose.msra.mxu0 0.0
    %536 = vmatprep.subr.mxu0 0.0
    %537 = vmatpush1.xpose.msra.mxu0 0.0
    %538 = vmatprep.subr.mxu0 0.0
    %539 = vmatpush1.xpose.msra.mxu0 0.0
    %540 = vmatprep.subr.mxu0 0.0
    %541 = vmatpush1.xpose.msra.mxu0 0.0
    %542 = vmatprep.subr.mxu0 0.0
    %543 = vmatpush1.xpose.msra.mxu0 0.0
    %544 = vmatprep.subr.mxu0 0.0
    %545 = vmatpush1.xpose.msra.mxu0 0.0
    %546 = vmatprep.subr.mxu0 0.0
    %547 = vmatpush1.xpose.msra.mxu0 0.0
    %548 = vmatprep.subr.mxu0 0.0
    %549 = vmatpush1.xpose.msra.mxu0 0.0
    %550 = vmatprep.subr.mxu0 0.0
    %551 = vmatpush1.xpose.msra.mxu0 0.0
    %552 = vmatprep.subr.mxu0 0.0
    %553 = vmatpush1.xpose.msra.mxu0 0.0
    %554 = vmatprep.subr.mxu0 0.0
    %555 = vmatpush1.xpose.msra.mxu0 0.0
    %556 = vmatprep.subr.mxu0 0.0
    %557 = vmatpush1.xpose.msra.mxu0 0.0
    %558 = vmatprep.subr.mxu0 0.0
    %559 = vmatpush1.xpose.msra.mxu0 0.0
    %560 = vmatprep.subr.mxu0 0.0
    %561 = vmatpush1.xpose.msra.mxu0 0.0
    %562 = vmatprep.subr.mxu0 0.0
    %563 = vmatpush1.xpose.msra.mxu0 0.0
    %564 = vmatprep.subr.mxu0 0.0
    %565 = vmatpush1.xpose.msra.mxu0 0.0
    %566 = vmatprep.subr.mxu0 0.0
    %567 = vmatpush1.xpose.msra.mxu0 0.0
    %568 = vmatprep.subr.mxu0 0.0
    %569 = vmatpush1.xpose.msra.mxu0 0.0
    %570 = vmatprep.subr.mxu0 0.0
    %571 = vmatpush1.xpose.msra.mxu0 0.0
    %572 = vmatprep.subr.mxu0 0.0
    %573 = vmatpush1.xpose.msra.mxu0 0.0
    %574 = vmatprep.subr.mxu0 0.0
    %575 = vmatpush1.xpose.msra.mxu0 0.0
    %576 = vmatprep.subr.mxu0 0.0
    %577 = vmatpush1.xpose.msra.mxu0 0.0
    %578 = vmatprep.subr.mxu0 0.0
    %579 = vmatpush1.xpose.msra.mxu0 0.0
    %580 = vmatprep.subr.mxu0 0.0
    %581 = vmatpush1.xpose.msra.mxu0 0.0
    %582 = vmatprep.subr.mxu0 0.0
    %583 = vmatpush1.xpose.msra.mxu0 0.0
    %584 = vmatprep.subr.mxu0 0.0
    %585 = vmatpush1.xpose.msra.mxu0 0.0
    %586 = vmatprep.subr.mxu0 0.0
    %587 = vmatpush1.xpose.msra.mxu0 0.0
    %588 = vmatprep.subr.mxu0 0.0
    %589 = vmatpush1.xpose.msra.mxu0 0.0
    %590 = vmatprep.subr.mxu0 0.0
    %591 = vmatpush1.xpose.msra.mxu0 0.0
    %592 = vmatprep.mubr.f32.mxu0 0.0
    %593 = vmatmul.mubr.f32.gmra.mrb[0].mxu0 %v524
    %v594 = vpop.f32.mrb[0].mxu0
    %v595 = vadd.f32 0.0, %v594
    %v596 = vpop.f32.mrb[0].mxu0
    %597 = vdwg.mxu0
    %598 = vrot.lane.b32.xlu0 %v123, 104
    %v599 = vpop.permute.xlu0 %598
    %600 = vrot.lane.b32.xlu0 %v123, 72
    %v601 = vpop.permute.xlu0 %600
    %v602 = vsel %vm134, %v599, 0
    %v604 = vsel %vm134, %v601, 0
    %606 = vmatprep.subr.mxu0 0.0
    %607 = vmatpush1.xpose.msra.mxu0 %v604
    %608 = vmatprep.subr.mxu0 0.0
    %609 = vmatpush1.xpose.msra.mxu0 0.0
    %610 = vmatprep.subr.mxu0 0.0
    %611 = vmatpush1.xpose.msra.mxu0 0.0
    %612 = vmatprep.subr.mxu0 0.0
    %613 = vmatpush1.xpose.msra.mxu0 0.0
    %614 = vmatprep.subr.mxu0 0.0
    %615 = vmatpush1.xpose.msra.mxu0 0.0
    %616 = vmatprep.subr.mxu0 0.0
    %617 = vmatpush1.xpose.msra.mxu0 0.0
    %618 = vmatprep.subr.mxu0 0.0
    %619 = vmatpush1.xpose.msra.mxu0 0.0
    %620 = vmatprep.subr.mxu0 0.0
    %621 = vmatpush1.xpose.msra.mxu0 0.0
    %622 = vmatprep.subr.mxu0 0.0
    %623 = vmatpush1.xpose.msra.mxu0 0.0
    %624 = vmatprep.subr.mxu0 0.0
    %625 = vmatpush1.xpose.msra.mxu0 0.0
    %626 = vmatprep.subr.mxu0 0.0
    %627 = vmatpush1.xpose.msra.mxu0 0.0
    %628 = vmatprep.subr.mxu0 0.0
    %629 = vmatpush1.xpose.msra.mxu0 0.0
    %630 = vmatprep.subr.mxu0 0.0
    %631 = vmatpush1.xpose.msra.mxu0 0.0
    %632 = vmatprep.subr.mxu0 0.0
    %633 = vmatpush1.xpose.msra.mxu0 0.0
    %634 = vmatprep.subr.mxu0 0.0
    %635 = vmatpush1.xpose.msra.mxu0 0.0
    %636 = vmatprep.subr.mxu0 0.0
    %637 = vmatpush1.xpose.msra.mxu0 0.0
    %638 = vmatprep.subr.mxu0 0.0
    %639 = vmatpush1.xpose.msra.mxu0 0.0
    %640 = vmatprep.subr.mxu0 0.0
    %641 = vmatpush1.xpose.msra.mxu0 0.0
    %642 = vmatprep.subr.mxu0 0.0
    %643 = vmatpush1.xpose.msra.mxu0 0.0
    %644 = vmatprep.subr.mxu0 0.0
    %645 = vmatpush1.xpose.msra.mxu0 0.0
    %646 = vmatprep.subr.mxu0 0.0
    %647 = vmatpush1.xpose.msra.mxu0 0.0
    %648 = vmatprep.subr.mxu0 0.0
    %649 = vmatpush1.xpose.msra.mxu0 0.0
    %650 = vmatprep.subr.mxu0 0.0
    %651 = vmatpush1.xpose.msra.mxu0 0.0
    %652 = vmatprep.subr.mxu0 0.0
    %653 = vmatpush1.xpose.msra.mxu0 0.0
    %654 = vmatprep.subr.mxu0 0.0
    %655 = vmatpush1.xpose.msra.mxu0 0.0
    %656 = vmatprep.subr.mxu0 0.0
    %657 = vmatpush1.xpose.msra.mxu0 0.0
    %658 = vmatprep.subr.mxu0 0.0
    %659 = vmatpush1.xpose.msra.mxu0 0.0
    %660 = vmatprep.subr.mxu0 0.0
    %661 = vmatpush1.xpose.msra.mxu0 0.0
    %662 = vmatprep.subr.mxu0 0.0
    %663 = vmatpush1.xpose.msra.mxu0 0.0
    %664 = vmatprep.subr.mxu0 0.0
    %665 = vmatpush1.xpose.msra.mxu0 0.0
    %666 = vmatprep.subr.mxu0 0.0
    %667 = vmatpush1.xpose.msra.mxu0 0.0
    %668 = vmatprep.subr.mxu0 0.0
    %669 = vmatpush1.xpose.msra.mxu0 0.0
    %670 = vmatprep.mubr.f32.mxu0 0.0
    %671 = vmatmul.mubr.f32.gmra.mrb[0].mxu0 %v602
    %v672 = vpop.f32.mrb[0].mxu0
    %v673 = vadd.f32 0.0, %v672
    %v674 = vpop.f32.mrb[0].mxu0
    %675 = vdwg.mxu0
    %676 = vrot.lane.b32.xlu0 %v128, 104
    %v677 = vpop.permute.xlu0 %676
    %678 = vrot.lane.b32.xlu0 %v128, 72
    %v679 = vpop.permute.xlu0 %678
    %v680 = vsel %vm134, %v677, 0
    %v682 = vsel %vm134, %v679, 0
    %684 = vmatprep.subr.mxu0 0.0
    %685 = vmatpush1.xpose.msra.mxu0 %v682
    %686 = vmatprep.subr.mxu0 0.0
    %687 = vmatpush1.xpose.msra.mxu0 0.0
    %688 = vmatprep.subr.mxu0 0.0
    %689 = vmatpush1.xpose.msra.mxu0 0.0
    %690 = vmatprep.subr.mxu0 0.0
    %691 = vmatpush1.xpose.msra.mxu0 0.0
    %692 = vmatprep.subr.mxu0 0.0
    %693 = vmatpush1.xpose.msra.mxu0 0.0
    %694 = vmatprep.subr.mxu0 0.0
    %695 = vmatpush1.xpose.msra.mxu0 0.0
    %696 = vmatprep.subr.mxu0 0.0
    %697 = vmatpush1.xpose.msra.mxu0 0.0
    %698 = vmatprep.subr.mxu0 0.0
    %699 = vmatpush1.xpose.msra.mxu0 0.0
    %700 = vmatprep.subr.mxu0 0.0
    %701 = vmatpush1.xpose.msra.mxu0 0.0
    %702 = vmatprep.subr.mxu0 0.0
    %703 = vmatpush1.xpose.msra.mxu0 0.0
    %704 = vmatprep.subr.mxu0 0.0
    %705 = vmatpush1.xpose.msra.mxu0 0.0
    %706 = vmatprep.subr.mxu0 0.0
    %707 = vmatpush1.xpose.msra.mxu0 0.0
    %708 = vmatprep.subr.mxu0 0.0
    %709 = vmatpush1.xpose.msra.mxu0 0.0
    %710 = vmatprep.subr.mxu0 0.0
    %711 = vmatpush1.xpose.msra.mxu0 0.0
    %712 = vmatprep.subr.mxu0 0.0
    %713 = vmatpush1.xpose.msra.mxu0 0.0
    %714 = vmatprep.subr.mxu0 0.0
    %715 = vmatpush1.xpose.msra.mxu0 0.0
    %716 = vmatprep.subr.mxu0 0.0
    %717 = vmatpush1.xpose.msra.mxu0 0.0
    %718 = vmatprep.subr.mxu0 0.0
    %719 = vmatpush1.xpose.msra.mxu0 0.0
    %720 = vmatprep.subr.mxu0 0.0
    %721 = vmatpush1.xpose.msra.mxu0 0.0
    %722 = vmatprep.subr.mxu0 0.0
    %723 = vmatpush1.xpose.msra.mxu0 0.0
    %724 = vmatprep.subr.mxu0 0.0
    %725 = vmatpush1.xpose.msra.mxu0 0.0
    %726 = vmatprep.subr.mxu0 0.0
    %727 = vmatpush1.xpose.msra.mxu0 0.0
    %728 = vmatprep.subr.mxu0 0.0
    %729 = vmatpush1.xpose.msra.mxu0 0.0
    %730 = vmatprep.subr.mxu0 0.0
    %731 = vmatpush1.xpose.msra.mxu0 0.0
    %732 = vmatprep.subr.mxu0 0.0
    %733 = vmatpush1.xpose.msra.mxu0 0.0
    %734 = vmatprep.subr.mxu0 0.0
    %735 = vmatpush1.xpose.msra.mxu0 0.0
    %736 = vmatprep.subr.mxu0 0.0
    %737 = vmatpush1.xpose.msra.mxu0 0.0
    %738 = vmatprep.subr.mxu0 0.0
    %739 = vmatpush1.xpose.msra.mxu0 0.0
    %740 = vmatprep.subr.mxu0 0.0
    %741 = vmatpush1.xpose.msra.mxu0 0.0
    %742 = vmatprep.subr.mxu0 0.0
    %743 = vmatpush1.xpose.msra.mxu0 0.0
    %744 = vmatprep.subr.mxu0 0.0
    %745 = vmatpush1.xpose.msra.mxu0 0.0
    %746 = vmatprep.subr.mxu0 0.0
    %747 = vmatpush1.xpose.msra.mxu0 0.0
    %748 = vmatprep.mubr.f32.mxu0 0.0
    %749 = vmatmul.mubr.f32.gmra.mrb[0].mxu0 %v680
    %v750 = vpop.f32.mrb[0].mxu0
    %v751 = vadd.f32 0.0, %v750
    %v752 = vpop.f32.mrb[0].mxu0
    %753 = vdwg.mxu0
    %v754 = vmul.f32 %v206, 0.35355338
    %v755 = vmul.f32 %v283, 0.35355338
    %v756 = vmul.f32 %v361, 0.35355338
    %v757 = vmul.f32 %v439, 0.35355338
    %v758 = vmul.f32 %v517, 0.35355338
    %v759 = vmul.f32 %v595, 0.35355338
    %v760 = vmul.f32 %v673, 0.35355338
    %v761 = vmul.f32 %v751, 0.35355338
    %v762 = vsel %vm134, %v754, -inf
    %763 = vmax.xlane.f32.xlu0 %v762
    %v764 = vpop.xlane.xlu0 %763
    %v765 = vsel %vm134, %v755, -inf
    %766 = vmax.xlane.f32.xlu0 %v765
    %v767 = vpop.xlane.xlu0 %766
    %v768 = vsel %vm134, %v756, -inf
    %769 = vmax.xlane.f32.xlu0 %v768
    %v770 = vpop.xlane.xlu0 %769
    %v771 = vsel %vm134, %v757, -inf
    %772 = vmax.xlane.f32.xlu0 %v771
    %v773 = vpop.xlane.xlu0 %772
    %v774 = vsel %vm134, %v758, -inf
    %775 = vmax.xlane.f32.xlu0 %v774
    %v776 = vpop.xlane.xlu0 %775
    %v777 = vsel %vm134, %v759, -inf
    %778 = vmax.xlane.f32.xlu0 %v777
    %v779 = vpop.xlane.xlu0 %778
    %v780 = vsel %vm134, %v760, -inf
    %781 = vmax.xlane.f32.xlu0 %v780
    %v782 = vpop.xlane.xlu0 %781
    %v783 = vsel %vm134, %v761, -inf
    %784 = vmax.xlane.f32.xlu0 %v783
    %v785 = vpop.xlane.xlu0 %784
    %v786 = vsub.f32 %v754, %v764
    %v787 = vsub.f32 %v755, %v767
    %v788 = vsub.f32 %v756, %v770
    %v789 = vsub.f32 %v757, %v773
    %v790 = vsub.f32 %v758, %v776
    %v791 = vsub.f32 %v759, %v779
    %v792 = vsub.f32 %v760, %v782
    %v793 = vsub.f32 %v761, %v785
    %v794 = vmul.f32 %v786, 1.442695
    %v795 = vpow.pop %v794
    %v796 = vmul.f32 %v787, 1.442695
    %v797 = vpow.pop %v796
    %v798 = vmul.f32 %v788, 1.442695
    %v799 = vpow.pop %v798
    %v800 = vmul.f32 %v789, 1.442695
    %v801 = vpow.pop %v800
    %v802 = vmul.f32 %v790, 1.442695
    %v803 = vpow.pop %v802
    %v804 = vmul.f32 %v791, 1.442695
    %v805 = vpow.pop %v804
    %v806 = vmul.f32 %v792, 1.442695
    %v807 = vpow.pop %v806
    %v808 = vmul.f32 %v793, 1.442695
    %v809 = vpow.pop %v808
    %v810 = vsel %vm134, %v795, 0.0
    %811 = vadd.xlane.f32.xlu0 %v810
    %v812 = vpop.xlane.xlu0 %811
    %v813 = vsel %vm134, %v797, 0.0
    %814 = vadd.xlane.f32.xlu0 %v813
    %v815 = vpop.xlane.xlu0 %814
    %v816 = vsel %vm134, %v799, 0.0
    %817 = vadd.xlane.f32.xlu0 %v816
    %v818 = vpop.xlane.xlu0 %817
    %v819 = vsel %vm134, %v801, 0.0
    %820 = vadd.xlane.f32.xlu0 %v819
    %v821 = vpop.xlane.xlu0 %820
    %v822 = vsel %vm134, %v803, 0.0
    %823 = vadd.xlane.f32.xlu0 %v822
    %v824 = vpop.xlane.xlu0 %823
    %v825 = vsel %vm134, %v805, 0.0
    %826 = vadd.xlane.f32.xlu0 %v825
    %v827 = vpop.xlane.xlu0 %826
    %v828 = vsel %vm134, %v807, 0.0
    %829 = vadd.xlane.f32.xlu0 %v828
    %v830 = vpop.xlane.xlu0 %829
    %v831 = vsel %vm134, %v809, 0.0
    %832 = vadd.xlane.f32.xlu0 %v831
    %v833 = vpop.xlane.xlu0 %832
    %v834 = vrcp.pop %v812
    %v835 = vrcp.pop %v815
    %v836 = vrcp.pop %v818
    %v837 = vrcp.pop %v821
    %v838 = vrcp.pop %v824
    %v839 = vrcp.pop %v827
    %v840 = vrcp.pop %v830
    %v841 = vrcp.pop %v833
    %v842 = vmul.f32 %v795, %v834
    %v843 = vmul.f32 %v797, %v835
    %v844 = vmul.f32 %v799, %v836
    %v845 = vmul.f32 %v801, %v837
    %v846 = vmul.f32 %v803, %v838
    %v847 = vmul.f32 %v805, %v839
    %v848 = vmul.f32 %v807, %v840
    %v849 = vmul.f32 %v809, %v841
    %850 = vrot.lane.b32.xlu0 %v123, 64
    %v851 = vpop.permute.xlu0 %850
    %v854 = vsel %vm134, %v842, 0
    %856 = vmatprep.subr.mxu0 0.0
    %857 = vmatpush1.msra.mxu0 %v851
    %858 = vmatprep.subr.mxu0 0.0
    %859 = vmatpush1.msra.mxu0 0.0
    %860 = vmatprep.subr.mxu0 0.0
    %861 = vmatpush1.msra.mxu0 0.0
    %862 = vmatprep.subr.mxu0 0.0
    %863 = vmatpush1.msra.mxu0 0.0
    %864 = vmatprep.subr.mxu0 0.0
    %865 = vmatpush1.msra.mxu0 0.0
    %866 = vmatprep.subr.mxu0 0.0
    %867 = vmatpush1.msra.mxu0 0.0
    %868 = vmatprep.subr.mxu0 0.0
    %869 = vmatpush1.msra.mxu0 0.0
    %870 = vmatprep.subr.mxu0 0.0
    %871 = vmatpush1.msra.mxu0 0.0
    %872 = vmatprep.subr.mxu0 0.0
    %873 = vmatpush1.msra.mxu0 0.0
    %874 = vmatprep.subr.mxu0 0.0
    %875 = vmatpush1.msra.mxu0 0.0
    %876 = vmatprep.subr.mxu0 0.0
    %877 = vmatpush1.msra.mxu0 0.0
    %878 = vmatprep.subr.mxu0 0.0
    %879 = vmatpush1.msra.mxu0 0.0
    %880 = vmatprep.subr.mxu0 0.0
    %881 = vmatpush1.msra.mxu0 0.0
    %882 = vmatprep.subr.mxu0 0.0
    %883 = vmatpush1.msra.mxu0 0.0
    %884 = vmatprep.subr.mxu0 0.0
    %885 = vmatpush1.msra.mxu0 0.0
    %886 = vmatprep.subr.mxu0 0.0
    %887 = vmatpush1.msra.mxu0 0.0
    %888 = vmatprep.subr.mxu0 0.0
    %889 = vmatpush1.msra.mxu0 0.0
    %890 = vmatprep.subr.mxu0 0.0
    %891 = vmatpush1.msra.mxu0 0.0
    %892 = vmatprep.subr.mxu0 0.0
    %893 = vmatpush1.msra.mxu0 0.0
    %894 = vmatprep.subr.mxu0 0.0
    %895 = vmatpush1.msra.mxu0 0.0
    %896 = vmatprep.subr.mxu0 0.0
    %897 = vmatpush1.msra.mxu0 0.0
    %898 = vmatprep.subr.mxu0 0.0
    %899 = vmatpush1.msra.mxu0 0.0
    %900 = vmatprep.subr.mxu0 0.0
    %901 = vmatpush1.msra.mxu0 0.0
    %902 = vmatprep.subr.mxu0 0.0
    %903 = vmatpush1.msra.mxu0 0.0
    %904 = vmatprep.subr.mxu0 0.0
    %905 = vmatpush1.msra.mxu0 0.0
    %906 = vmatprep.subr.mxu0 0.0
    %907 = vmatpush1.msra.mxu0 0.0
    %908 = vmatprep.subr.mxu0 0.0
    %909 = vmatpush1.msra.mxu0 0.0
    %910 = vmatprep.subr.mxu0 0.0
    %911 = vmatpush1.msra.mxu0 0.0
    %912 = vmatprep.subr.mxu0 0.0
    %913 = vmatpush1.msra.mxu0 0.0
    %914 = vmatprep.subr.mxu0 0.0
    %915 = vmatpush1.msra.mxu0 0.0
    %916 = vmatprep.subr.mxu0 0.0
    %917 = vmatpush1.msra.mxu0 0.0
    %918 = vmatprep.subr.mxu0 0.0
    %919 = vmatpush1.msra.mxu0 0.0
    %920 = vmatprep.mubr.f32.mxu0 0.0
    %921 = vmatmul.mubr.f32.gmra.mrb[0].mxu0 %v854
    %v922 = vpop.f32.mrb[0].mxu0
    %v923 = vadd.f32 0.0, %v922
    %v924 = vpop.f32.mrb[0].mxu0
    %925 = vdwg.mxu0
    %926 = vrot.lane.b32.xlu0 %v128, 64
    %v927 = vpop.permute.xlu0 %926
    %v930 = vsel %vm134, %v843, 0
    %932 = vmatprep.subr.mxu0 0.0
    %933 = vmatpush1.msra.mxu0 %v927
    %934 = vmatprep.subr.mxu0 0.0
    %935 = vmatpush1.msra.mxu0 0.0
    %936 = vmatprep.subr.mxu0 0.0
    %937 = vmatpush1.msra.mxu0 0.0
    %938 = vmatprep.subr.mxu0 0.0
    %939 = vmatpush1.msra.mxu0 0.0
    %940 = vmatprep.subr.mxu0 0.0
    %941 = vmatpush1.msra.mxu0 0.0
    %942 = vmatprep.subr.mxu0 0.0
    %943 = vmatpush1.msra.mxu0 0.0
    %944 = vmatprep.subr.mxu0 0.0
    %945 = vmatpush1.msra.mxu0 0.0
    %946 = vmatprep.subr.mxu0 0.0
    %947 = vmatpush1.msra.mxu0 0.0
    %948 = vmatprep.subr.mxu0 0.0
    %949 = vmatpush1.msra.mxu0 0.0
    %950 = vmatprep.subr.mxu0 0.0
    %951 = vmatpush1.msra.mxu0 0.0
    %952 = vmatprep.subr.mxu0 0.0
    %953 = vmatpush1.msra.mxu0 0.0
    %954 = vmatprep.subr.mxu0 0.0
    %955 = vmatpush1.msra.mxu0 0.0
    %956 = vmatprep.subr.mxu0 0.0
    %957 = vmatpush1.msra.mxu0 0.0
    %958 = vmatprep.subr.mxu0 0.0
    %959 = vmatpush1.msra.mxu0 0.0
    %960 = vmatprep.subr.mxu0 0.0
    %961 = vmatpush1.msra.mxu0 0.0
    %962 = vmatprep.subr.mxu0 0.0
    %963 = vmatpush1.msra.mxu0 0.0
    %964 = vmatprep.subr.mxu0 0.0
    %965 = vmatpush1.msra.mxu0 0.0
    %966 = vmatprep.subr.mxu0 0.0
    %967 = vmatpush1.msra.mxu0 0.0
    %968 = vmatprep.subr.mxu0 0.0
    %969 = vmatpush1.msra.mxu0 0.0
    %970 = vmatprep.subr.mxu0 0.0
    %971 = vmatpush1.msra.mxu0 0.0
    %972 = vmatprep.subr.mxu0 0.0
    %973 = vmatpush1.msra.mxu0 0.0
    %974 = vmatprep.subr.mxu0 0.0
    %975 = vmatpush1.msra.mxu0 0.0
    %976 = vmatprep.subr.mxu0 0.0
    %977 = vmatpush1.msra.mxu0 0.0
    %978 = vmatprep.subr.mxu0 0.0
    %979 = vmatpush1.msra.mxu0 0.0
    %980 = vmatprep.subr.mxu0 0.0
    %981 = vmatpush1.msra.mxu0 0.0
    %982 = vmatprep.subr.mxu0 0.0
    %983 = vmatpush1.msra.mxu0 0.0
    %984 = vmatprep.subr.mxu0 0.0
    %985 = vmatpush1.msra.mxu0 0.0
    %986 = vmatprep.subr.mxu0 0.0
    %987 = vmatpush1.msra.mxu0 0.0
    %988 = vmatprep.subr.mxu0 0.0
    %989 = vmatpush1.msra.mxu0 0.0
    %990 = vmatprep.subr.mxu0 0.0
    %991 = vmatpush1.msra.mxu0 0.0
    %992 = vmatprep.subr.mxu0 0.0
    %993 = vmatpush1.msra.mxu0 0.0
    %994 = vmatprep.subr.mxu0 0.0
    %995 = vmatpush1.msra.mxu0 0.0
    %996 = vmatprep.mubr.f32.mxu0 0.0
    %997 = vmatmul.mubr.f32.gmra.mrb[0].mxu0 %v930
    %v998 = vpop.f32.mrb[0].mxu0
    %v999 = vadd.f32 0.0, %v998
    %v1000 = vpop.f32.mrb[0].mxu0
    %1001 = vdwg.mxu0
    %1002 = vrot.lane.b32.xlu0 %v123, 56
    %v1003 = vpop.permute.xlu0 %1002
    %v1006 = vsel %vm134, %v844, 0
    %1008 = vmatprep.subr.mxu0 0.0
    %1009 = vmatpush1.msra.mxu0 %v1003
    %1010 = vmatprep.subr.mxu0 0.0
    %1011 = vmatpush1.msra.mxu0 0.0
    %1012 = vmatprep.subr.mxu0 0.0
    %1013 = vmatpush1.msra.mxu0 0.0
    %1014 = vmatprep.subr.mxu0 0.0
    %1015 = vmatpush1.msra.mxu0 0.0
    %1016 = vmatprep.subr.mxu0 0.0
    %1017 = vmatpush1.msra.mxu0 0.0
    %1018 = vmatprep.subr.mxu0 0.0
    %1019 = vmatpush1.msra.mxu0 0.0
    %1020 = vmatprep.subr.mxu0 0.0
    %1021 = vmatpush1.msra.mxu0 0.0
    %1022 = vmatprep.subr.mxu0 0.0
    %1023 = vmatpush1.msra.mxu0 0.0
    %1024 = vmatprep.subr.mxu0 0.0
    %1025 = vmatpush1.msra.mxu0 0.0
    %1026 = vmatprep.subr.mxu0 0.0
    %1027 = vmatpush1.msra.mxu0 0.0
    %1028 = vmatprep.subr.mxu0 0.0
    %1029 = vmatpush1.msra.mxu0 0.0
    %1030 = vmatprep.subr.mxu0 0.0
    %1031 = vmatpush1.msra.mxu0 0.0
    %1032 = vmatprep.subr.mxu0 0.0
    %1033 = vmatpush1.msra.mxu0 0.0
    %1034 = vmatprep.subr.mxu0 0.0
    %1035 = vmatpush1.msra.mxu0 0.0
    %1036 = vmatprep.subr.mxu0 0.0
    %1037 = vmatpush1.msra.mxu0 0.0
    %1038 = vmatprep.subr.mxu0 0.0
    %1039 = vmatpush1.msra.mxu0 0.0
    %1040 = vmatprep.subr.mxu0 0.0
    %1041 = vmatpush1.msra.mxu0 0.0
    %1042 = vmatprep.subr.mxu0 0.0
    %1043 = vmatpush1.msra.mxu0 0.0
    %1044 = vmatprep.subr.mxu0 0.0
    %1045 = vmatpush1.msra.mxu0 0.0
    %1046 = vmatprep.subr.mxu0 0.0
    %1047 = vmatpush1.msra.mxu0 0.0
    %1048 = vmatprep.subr.mxu0 0.0
    %1049 = vmatpush1.msra.mxu0 0.0
    %1050 = vmatprep.subr.mxu0 0.0
    %1051 = vmatpush1.msra.mxu0 0.0
    %1052 = vmatprep.subr.mxu0 0.0
    %1053 = vmatpush1.msra.mxu0 0.0
    %1054 = vmatprep.subr.mxu0 0.0
    %1055 = vmatpush1.msra.mxu0 0.0
    %1056 = vmatprep.subr.mxu0 0.0
    %1057 = vmatpush1.msra.mxu0 0.0
    %1058 = vmatprep.subr.mxu0 0.0
    %1059 = vmatpush1.msra.mxu0 0.0
    %1060 = vmatprep.subr.mxu0 0.0
    %1061 = vmatpush1.msra.mxu0 0.0
    %1062 = vmatprep.subr.mxu0 0.0
    %1063 = vmatpush1.msra.mxu0 0.0
    %1064 = vmatprep.subr.mxu0 0.0
    %1065 = vmatpush1.msra.mxu0 0.0
    %1066 = vmatprep.subr.mxu0 0.0
    %1067 = vmatpush1.msra.mxu0 0.0
    %1068 = vmatprep.subr.mxu0 0.0
    %1069 = vmatpush1.msra.mxu0 0.0
    %1070 = vmatprep.subr.mxu0 0.0
    %1071 = vmatpush1.msra.mxu0 0.0
    %1072 = vmatprep.mubr.f32.mxu0 0.0
    %1073 = vmatmul.mubr.f32.gmra.mrb[0].mxu0 %v1006
    %v1074 = vpop.f32.mrb[0].mxu0
    %v1075 = vadd.f32 0.0, %v1074
    %v1076 = vpop.f32.mrb[0].mxu0
    %1077 = vdwg.mxu0
    %1078 = vrot.lane.b32.xlu0 %v128, 56
    %v1079 = vpop.permute.xlu0 %1078
    %v1082 = vsel %vm134, %v845, 0
    %1084 = vmatprep.subr.mxu0 0.0
    %1085 = vmatpush1.msra.mxu0 %v1079
    %1086 = vmatprep.subr.mxu0 0.0
    %1087 = vmatpush1.msra.mxu0 0.0
    %1088 = vmatprep.subr.mxu0 0.0
    %1089 = vmatpush1.msra.mxu0 0.0
    %1090 = vmatprep.subr.mxu0 0.0
    %1091 = vmatpush1.msra.mxu0 0.0
    %1092 = vmatprep.subr.mxu0 0.0
    %1093 = vmatpush1.msra.mxu0 0.0
    %1094 = vmatprep.subr.mxu0 0.0
    %1095 = vmatpush1.msra.mxu0 0.0
    %1096 = vmatprep.subr.mxu0 0.0
    %1097 = vmatpush1.msra.mxu0 0.0
    %1098 = vmatprep.subr.mxu0 0.0
    %1099 = vmatpush1.msra.mxu0 0.0
    %1100 = vmatprep.subr.mxu0 0.0
    %1101 = vmatpush1.msra.mxu0 0.0
    %1102 = vmatprep.subr.mxu0 0.0
    %1103 = vmatpush1.msra.mxu0 0.0
    %1104 = vmatprep.subr.mxu0 0.0
    %1105 = vmatpush1.msra.mxu0 0.0
    %1106 = vmatprep.subr.mxu0 0.0
    %1107 = vmatpush1.msra.mxu0 0.0
    %1108 = vmatprep.subr.mxu0 0.0
    %1109 = vmatpush1.msra.mxu0 0.0
    %1110 = vmatprep.subr.mxu0 0.0
    %1111 = vmatpush1.msra.mxu0 0.0
    %1112 = vmatprep.subr.mxu0 0.0
    %1113 = vmatpush1.msra.mxu0 0.0
    %1114 = vmatprep.subr.mxu0 0.0
    %1115 = vmatpush1.msra.mxu0 0.0
    %1116 = vmatprep.subr.mxu0 0.0
    %1117 = vmatpush1.msra.mxu0 0.0
    %1118 = vmatprep.subr.mxu0 0.0
    %1119 = vmatpush1.msra.mxu0 0.0
    %1120 = vmatprep.subr.mxu0 0.0
    %1121 = vmatpush1.msra.mxu0 0.0
    %1122 = vmatprep.subr.mxu0 0.0
    %1123 = vmatpush1.msra.mxu0 0.0
    %1124 = vmatprep.subr.mxu0 0.0
    %1125 = vmatpush1.msra.mxu0 0.0
    %1126 = vmatprep.subr.mxu0 0.0
    %1127 = vmatpush1.msra.mxu0 0.0
    %1128 = vmatprep.subr.mxu0 0.0
    %1129 = vmatpush1.msra.mxu0 0.0
    %1130 = vmatprep.subr.mxu0 0.0
    %1131 = vmatpush1.msra.mxu0 0.0
    %1132 = vmatprep.subr.mxu0 0.0
    %1133 = vmatpush1.msra.mxu0 0.0
    %1134 = vmatprep.subr.mxu0 0.0
    %1135 = vmatpush1.msra.mxu0 0.0
    %1136 = vmatprep.subr.mxu0 0.0
    %1137 = vmatpush1.msra.mxu0 0.0
    %1138 = vmatprep.subr.mxu0 0.0
    %1139 = vmatpush1.msra.mxu0 0.0
    %1140 = vmatprep.subr.mxu0 0.0
    %1141 = vmatpush1.msra.mxu0 0.0
    %1142 = vmatprep.subr.mxu0 0.0
    %1143 = vmatpush1.msra.mxu0 0.0
    %1144 = vmatprep.subr.mxu0 0.0
    %1145 = vmatpush1.msra.mxu0 0.0
    %1146 = vmatprep.subr.mxu0 0.0
    %1147 = vmatpush1.msra.mxu0 0.0
    %1148 = vmatprep.mubr.f32.mxu0 0.0
    %1149 = vmatmul.mubr.f32.gmra.mrb[0].mxu0 %v1082
    %v1150 = vpop.f32.mrb[0].mxu0
    %v1151 = vadd.f32 0.0, %v1150
    %v1152 = vpop.f32.mrb[0].mxu0
    %1153 = vdwg.mxu0
    %1154 = vrot.lane.b32.xlu0 %v123, 48
    %v1155 = vpop.permute.xlu0 %1154
    %v1158 = vsel %vm134, %v846, 0
    %1160 = vmatprep.subr.mxu0 0.0
    %1161 = vmatpush1.msra.mxu0 %v1155
    %1162 = vmatprep.subr.mxu0 0.0
    %1163 = vmatpush1.msra.mxu0 0.0
    %1164 = vmatprep.subr.mxu0 0.0
    %1165 = vmatpush1.msra.mxu0 0.0
    %1166 = vmatprep.subr.mxu0 0.0
    %1167 = vmatpush1.msra.mxu0 0.0
    %1168 = vmatprep.subr.mxu0 0.0
    %1169 = vmatpush1.msra.mxu0 0.0
    %1170 = vmatprep.subr.mxu0 0.0
    %1171 = vmatpush1.msra.mxu0 0.0
    %1172 = vmatprep.subr.mxu0 0.0
    %1173 = vmatpush1.msra.mxu0 0.0
    %1174 = vmatprep.subr.mxu0 0.0
    %1175 = vmatpush1.msra.mxu0 0.0
    %1176 = vmatprep.subr.mxu0 0.0
    %1177 = vmatpush1.msra.mxu0 0.0
    %1178 = vmatprep.subr.mxu0 0.0
    %1179 = vmatpush1.msra.mxu0 0.0
    %1180 = vmatprep.subr.mxu0 0.0
    %1181 = vmatpush1.msra.mxu0 0.0
    %1182 = vmatprep.subr.mxu0 0.0
    %1183 = vmatpush1.msra.mxu0 0.0
    %1184 = vmatprep.subr.mxu0 0.0
    %1185 = vmatpush1.msra.mxu0 0.0
    %1186 = vmatprep.subr.mxu0 0.0
    %1187 = vmatpush1.msra.mxu0 0.0
    %1188 = vmatprep.subr.mxu0 0.0
    %1189 = vmatpush1.msra.mxu0 0.0
    %1190 = vmatprep.subr.mxu0 0.0
    %1191 = vmatpush1.msra.mxu0 0.0
    %1192 = vmatprep.subr.mxu0 0.0
    %1193 = vmatpush1.msra.mxu0 0.0
    %1194 = vmatprep.subr.mxu0 0.0
    %1195 = vmatpush1.msra.mxu0 0.0
    %1196 = vmatprep.subr.mxu0 0.0
    %1197 = vmatpush1.msra.mxu0 0.0
    %1198 = vmatprep.subr.mxu0 0.0
    %1199 = vmatpush1.msra.mxu0 0.0
    %1200 = vmatprep.subr.mxu0 0.0
    %1201 = vmatpush1.msra.mxu0 0.0
    %1202 = vmatprep.subr.mxu0 0.0
    %1203 = vmatpush1.msra.mxu0 0.0
    %1204 = vmatprep.subr.mxu0 0.0
    %1205 = vmatpush1.msra.mxu0 0.0
    %1206 = vmatprep.subr.mxu0 0.0
    %1207 = vmatpush1.msra.mxu0 0.0
    %1208 = vmatprep.subr.mxu0 0.0
    %1209 = vmatpush1.msra.mxu0 0.0
    %1210 = vmatprep.subr.mxu0 0.0
    %1211 = vmatpush1.msra.mxu0 0.0
    %1212 = vmatprep.subr.mxu0 0.0
    %1213 = vmatpush1.msra.mxu0 0.0
    %1214 = vmatprep.subr.mxu0 0.0
    %1215 = vmatpush1.msra.mxu0 0.0
    %1216 = vmatprep.subr.mxu0 0.0
    %1217 = vmatpush1.msra.mxu0 0.0
    %1218 = vmatprep.subr.mxu0 0.0
    %1219 = vmatpush1.msra.mxu0 0.0
    %1220 = vmatprep.subr.mxu0 0.0
    %1221 = vmatpush1.msra.mxu0 0.0
    %1222 = vmatprep.subr.mxu0 0.0
    %1223 = vmatpush1.msra.mxu0 0.0
    %1224 = vmatprep.mubr.f32.mxu0 0.0
    %1225 = vmatmul.mubr.f32.gmra.mrb[0].mxu0 %v1158
    %v1226 = vpop.f32.mrb[0].mxu0
    %v1227 = vadd.f32 0.0, %v1226
    %v1228 = vpop.f32.mrb[0].mxu0
    %1229 = vdwg.mxu0
    %1230 = vrot.lane.b32.xlu0 %v128, 48
    %v1231 = vpop.permute.xlu0 %1230
    %v1234 = vsel %vm134, %v847, 0
    %1236 = vmatprep.subr.mxu0 0.0
    %1237 = vmatpush1.msra.mxu0 %v1231
    %1238 = vmatprep.subr.mxu0 0.0
    %1239 = vmatpush1.msra.mxu0 0.0
    %1240 = vmatprep.subr.mxu0 0.0
    %1241 = vmatpush1.msra.mxu0 0.0
    %1242 = vmatprep.subr.mxu0 0.0
    %1243 = vmatpush1.msra.mxu0 0.0
    %1244 = vmatprep.subr.mxu0 0.0
    %1245 = vmatpush1.msra.mxu0 0.0
    %1246 = vmatprep.subr.mxu0 0.0
    %1247 = vmatpush1.msra.mxu0 0.0
    %1248 = vmatprep.subr.mxu0 0.0
    %1249 = vmatpush1.msra.mxu0 0.0
    %1250 = vmatprep.subr.mxu0 0.0
    %1251 = vmatpush1.msra.mxu0 0.0
    %1252 = vmatprep.subr.mxu0 0.0
    %1253 = vmatpush1.msra.mxu0 0.0
    %1254 = vmatprep.subr.mxu0 0.0
    %1255 = vmatpush1.msra.mxu0 0.0
    %1256 = vmatprep.subr.mxu0 0.0
    %1257 = vmatpush1.msra.mxu0 0.0
    %1258 = vmatprep.subr.mxu0 0.0
    %1259 = vmatpush1.msra.mxu0 0.0
    %1260 = vmatprep.subr.mxu0 0.0
    %1261 = vmatpush1.msra.mxu0 0.0
    %1262 = vmatprep.subr.mxu0 0.0
    %1263 = vmatpush1.msra.mxu0 0.0
    %1264 = vmatprep.subr.mxu0 0.0
    %1265 = vmatpush1.msra.mxu0 0.0
    %1266 = vmatprep.subr.mxu0 0.0
    %1267 = vmatpush1.msra.mxu0 0.0
    %1268 = vmatprep.subr.mxu0 0.0
    %1269 = vmatpush1.msra.mxu0 0.0
    %1270 = vmatprep.subr.mxu0 0.0
    %1271 = vmatpush1.msra.mxu0 0.0
    %1272 = vmatprep.subr.mxu0 0.0
    %1273 = vmatpush1.msra.mxu0 0.0
    %1274 = vmatprep.subr.mxu0 0.0
    %1275 = vmatpush1.msra.mxu0 0.0
    %1276 = vmatprep.subr.mxu0 0.0
    %1277 = vmatpush1.msra.mxu0 0.0
    %1278 = vmatprep.subr.mxu0 0.0
    %1279 = vmatpush1.msra.mxu0 0.0
    %1280 = vmatprep.subr.mxu0 0.0
    %1281 = vmatpush1.msra.mxu0 0.0
    %1282 = vmatprep.subr.mxu0 0.0
    %1283 = vmatpush1.msra.mxu0 0.0
    %1284 = vmatprep.subr.mxu0 0.0
    %1285 = vmatpush1.msra.mxu0 0.0
    %1286 = vmatprep.subr.mxu0 0.0
    %1287 = vmatpush1.msra.mxu0 0.0
    %1288 = vmatprep.subr.mxu0 0.0
    %1289 = vmatpush1.msra.mxu0 0.0
    %1290 = vmatprep.subr.mxu0 0.0
    %1291 = vmatpush1.msra.mxu0 0.0
    %1292 = vmatprep.subr.mxu0 0.0
    %1293 = vmatpush1.msra.mxu0 0.0
    %1294 = vmatprep.subr.mxu0 0.0
    %1295 = vmatpush1.msra.mxu0 0.0
    %1296 = vmatprep.subr.mxu0 0.0
    %1297 = vmatpush1.msra.mxu0 0.0
    %1298 = vmatprep.subr.mxu0 0.0
    %1299 = vmatpush1.msra.mxu0 0.0
    %1300 = vmatprep.mubr.f32.mxu0 0.0
    %1301 = vmatmul.mubr.f32.gmra.mrb[0].mxu0 %v1234
    %v1302 = vpop.f32.mrb[0].mxu0
    %v1303 = vadd.f32 0.0, %v1302
    %v1304 = vpop.f32.mrb[0].mxu0
    %1305 = vdwg.mxu0
    %1306 = vrot.lane.b32.xlu0 %v123, 40
    %v1307 = vpop.permute.xlu0 %1306
    %v1310 = vsel %vm134, %v848, 0
    %1312 = vmatprep.subr.mxu0 0.0
    %1313 = vmatpush1.msra.mxu0 %v1307
    %1314 = vmatprep.subr.mxu0 0.0
    %1315 = vmatpush1.msra.mxu0 0.0
    %1316 = vmatprep.subr.mxu0 0.0
    %1317 = vmatpush1.msra.mxu0 0.0
    %1318 = vmatprep.subr.mxu0 0.0
    %1319 = vmatpush1.msra.mxu0 0.0
    %1320 = vmatprep.subr.mxu0 0.0
    %1321 = vmatpush1.msra.mxu0 0.0
    %1322 = vmatprep.subr.mxu0 0.0
    %1323 = vmatpush1.msra.mxu0 0.0
    %1324 = vmatprep.subr.mxu0 0.0
    %1325 = vmatpush1.msra.mxu0 0.0
    %1326 = vmatprep.subr.mxu0 0.0
    %1327 = vmatpush1.msra.mxu0 0.0
    %1328 = vmatprep.subr.mxu0 0.0
    %1329 = vmatpush1.msra.mxu0 0.0
    %1330 = vmatprep.subr.mxu0 0.0
    %1331 = vmatpush1.msra.mxu0 0.0
    %1332 = vmatprep.subr.mxu0 0.0
    %1333 = vmatpush1.msra.mxu0 0.0
    %1334 = vmatprep.subr.mxu0 0.0
    %1335 = vmatpush1.msra.mxu0 0.0
    %1336 = vmatprep.subr.mxu0 0.0
    %1337 = vmatpush1.msra.mxu0 0.0
    %1338 = vmatprep.subr.mxu0 0.0
    %1339 = vmatpush1.msra.mxu0 0.0
    %1340 = vmatprep.subr.mxu0 0.0
    %1341 = vmatpush1.msra.mxu0 0.0
    %1342 = vmatprep.subr.mxu0 0.0
    %1343 = vmatpush1.msra.mxu0 0.0
    %1344 = vmatprep.subr.mxu0 0.0
    %1345 = vmatpush1.msra.mxu0 0.0
    %1346 = vmatprep.subr.mxu0 0.0
    %1347 = vmatpush1.msra.mxu0 0.0
    %1348 = vmatprep.subr.mxu0 0.0
    %1349 = vmatpush1.msra.mxu0 0.0
    %1350 = vmatprep.subr.mxu0 0.0
    %1351 = vmatpush1.msra.mxu0 0.0
    %1352 = vmatprep.subr.mxu0 0.0
    %1353 = vmatpush1.msra.mxu0 0.0
    %1354 = vmatprep.subr.mxu0 0.0
    %1355 = vmatpush1.msra.mxu0 0.0
    %1356 = vmatprep.subr.mxu0 0.0
    %1357 = vmatpush1.msra.mxu0 0.0
    %1358 = vmatprep.subr.mxu0 0.0
    %1359 = vmatpush1.msra.mxu0 0.0
    %1360 = vmatprep.subr.mxu0 0.0
    %1361 = vmatpush1.msra.mxu0 0.0
    %1362 = vmatprep.subr.mxu0 0.0
    %1363 = vmatpush1.msra.mxu0 0.0
    %1364 = vmatprep.subr.mxu0 0.0
    %1365 = vmatpush1.msra.mxu0 0.0
    %1366 = vmatprep.subr.mxu0 0.0
    %1367 = vmatpush1.msra.mxu0 0.0
    %1368 = vmatprep.subr.mxu0 0.0
    %1369 = vmatpush1.msra.mxu0 0.0
    %1370 = vmatprep.subr.mxu0 0.0
    %1371 = vmatpush1.msra.mxu0 0.0
    %1372 = vmatprep.subr.mxu0 0.0
    %1373 = vmatpush1.msra.mxu0 0.0
    %1374 = vmatprep.subr.mxu0 0.0
    %1375 = vmatpush1.msra.mxu0 0.0
    %1376 = vmatprep.mubr.f32.mxu0 0.0
    %1377 = vmatmul.mubr.f32.gmra.mrb[0].mxu0 %v1310
    %v1378 = vpop.f32.mrb[0].mxu0
    %v1379 = vadd.f32 0.0, %v1378
    %v1380 = vpop.f32.mrb[0].mxu0
    %1381 = vdwg.mxu0
    %1382 = vrot.lane.b32.xlu0 %v128, 40
    %v1383 = vpop.permute.xlu0 %1382
    %v1386 = vsel %vm134, %v849, 0
    %1388 = vmatprep.subr.mxu0 0.0
    %1389 = vmatpush1.msra.mxu0 %v1383
    %1390 = vmatprep.subr.mxu0 0.0
    %1391 = vmatpush1.msra.mxu0 0.0
    %1392 = vmatprep.subr.mxu0 0.0
    %1393 = vmatpush1.msra.mxu0 0.0
    %1394 = vmatprep.subr.mxu0 0.0
    %1395 = vmatpush1.msra.mxu0 0.0
    %1396 = vmatprep.subr.mxu0 0.0
    %1397 = vmatpush1.msra.mxu0 0.0
    %1398 = vmatprep.subr.mxu0 0.0
    %1399 = vmatpush1.msra.mxu0 0.0
    %1400 = vmatprep.subr.mxu0 0.0
    %1401 = vmatpush1.msra.mxu0 0.0
    %1402 = vmatprep.subr.mxu0 0.0
    %1403 = vmatpush1.msra.mxu0 0.0
    %1404 = vmatprep.subr.mxu0 0.0
    %1405 = vmatpush1.msra.mxu0 0.0
    %1406 = vmatprep.subr.mxu0 0.0
    %1407 = vmatpush1.msra.mxu0 0.0
    %1408 = vmatprep.subr.mxu0 0.0
    %1409 = vmatpush1.msra.mxu0 0.0
    %1410 = vmatprep.subr.mxu0 0.0
    %1411 = vmatpush1.msra.mxu0 0.0
    %1412 = vmatprep.subr.mxu0 0.0
    %1413 = vmatpush1.msra.mxu0 0.0
    %1414 = vmatprep.subr.mxu0 0.0
    %1415 = vmatpush1.msra.mxu0 0.0
    %1416 = vmatprep.subr.mxu0 0.0
    %1417 = vmatpush1.msra.mxu0 0.0
    %1418 = vmatprep.subr.mxu0 0.0
    %1419 = vmatpush1.msra.mxu0 0.0
    %1420 = vmatprep.subr.mxu0 0.0
    %1421 = vmatpush1.msra.mxu0 0.0
    %1422 = vmatprep.subr.mxu0 0.0
    %1423 = vmatpush1.msra.mxu0 0.0
    %1424 = vmatprep.subr.mxu0 0.0
    %1425 = vmatpush1.msra.mxu0 0.0
    %1426 = vmatprep.subr.mxu0 0.0
    %1427 = vmatpush1.msra.mxu0 0.0
    %1428 = vmatprep.subr.mxu0 0.0
    %1429 = vmatpush1.msra.mxu0 0.0
    %1430 = vmatprep.subr.mxu0 0.0
    %1431 = vmatpush1.msra.mxu0 0.0
    %1432 = vmatprep.subr.mxu0 0.0
    %1433 = vmatpush1.msra.mxu0 0.0
    %1434 = vmatprep.subr.mxu0 0.0
    %1435 = vmatpush1.msra.mxu0 0.0
    %1436 = vmatprep.subr.mxu0 0.0
    %1437 = vmatpush1.msra.mxu0 0.0
    %1438 = vmatprep.subr.mxu0 0.0
    %1439 = vmatpush1.msra.mxu0 0.0
    %1440 = vmatprep.subr.mxu0 0.0
    %1441 = vmatpush1.msra.mxu0 0.0
    %1442 = vmatprep.subr.mxu0 0.0
    %1443 = vmatpush1.msra.mxu0 0.0
    %1444 = vmatprep.subr.mxu0 0.0
    %1445 = vmatpush1.msra.mxu0 0.0
    %1446 = vmatprep.subr.mxu0 0.0
    %1447 = vmatpush1.msra.mxu0 0.0
    %1448 = vmatprep.subr.mxu0 0.0
    %1449 = vmatpush1.msra.mxu0 0.0
    %1450 = vmatprep.subr.mxu0 0.0
    %1451 = vmatpush1.msra.mxu0 0.0
    %1452 = vmatprep.mubr.f32.mxu0 0.0
    %1453 = vmatmul.mubr.f32.gmra.mrb[0].mxu0 %v1386
    %v1454 = vpop.f32.mrb[0].mxu0
    %v1455 = vadd.f32 0.0, %v1454
    %v1456 = vpop.f32.mrb[0].mxu0
    %1457 = vdwg.mxu0
    %1460 = vrot.lane.b32.xlu0 %v1075, 8
    %v1461 = vpop.permute.xlu0 %1460
    %1462 = vrot.lane.b32.xlu0 %v1151, 8
    %v1463 = vpop.permute.xlu0 %1462
    %1468 = vrot.lane.b32.xlu0 %v1227, 16
    %v1469 = vpop.permute.xlu0 %1468
    %1470 = vrot.lane.b32.xlu0 %v1303, 16
    %v1471 = vpop.permute.xlu0 %1470
    %1476 = vrot.lane.b32.xlu0 %v1379, 24
    %v1477 = vpop.permute.xlu0 %1476
    %1478 = vrot.lane.b32.xlu0 %v1455, 24
    %v1479 = vpop.permute.xlu0 %1478
    %v1482 = vsel %vm134, %v923, %v1461
    %v1483 = vsel %vm134, %v999, %v1463
    %vm1484 = vcmask 130048
    %v1485 = vsel %vm1484, %v1482, %v1469
    %v1486 = vsel %vm1484, %v1483, %v1471
    %vm1487 = vcmask 195584
    %v1488 = vsel %vm1487, %v1485, %v1477
    %v1489 = vsel %vm1487, %v1486, %v1479
    %v1490 = vld [vmem:[%s2] sm:$0xff]
    %v1491 = vld [vmem:[%s2 + $0x8] sm:$0xff]
    %v1492 = vld [vmem:[%s2 + $0x10] sm:$0xff]
    %v1493 = vld [vmem:[%s2 + $0x18] sm:$0xff]
    %v1494 = vlaneseq
    %v1495 = vshrl.u32 %v1494, 7
    %v1496 = vsub.s32 1, %v1495
    %v1497 = vrot.slane %v40, %v1496
    %v1499 = vsel %vm49, %v1488, 0
    %v1502 = vsel %vm49, %v1489, 0
    %1504 = vmatprep.subr.mxu0 0.0
    %1505 = vmatpush1.msra.mxu0 %v1490
    %1506 = vmatprep.subr.mxu0 0.0
    %1507 = vmatpush1.msra.mxu0 %v1491
    %1508 = vmatprep.subr.mxu0 0.0
    %1509 = vmatpush1.msra.mxu0 %v1492
    %1510 = vmatprep.subr.mxu0 0.0
    %1511 = vmatpush1.msra.mxu0 %v1493
    %1512 = vmatprep.subr.mxu0 0.0
    %1513 = vmatpush1.msra.mxu0 0.0
    %1514 = vmatprep.subr.mxu0 0.0
    %1515 = vmatpush1.msra.mxu0 0.0
    %1516 = vmatprep.subr.mxu0 0.0
    %1517 = vmatpush1.msra.mxu0 0.0
    %1518 = vmatprep.subr.mxu0 0.0
    %1519 = vmatpush1.msra.mxu0 0.0
    %1520 = vmatprep.subr.mxu0 0.0
    %1521 = vmatpush1.msra.mxu0 0.0
    %1522 = vmatprep.subr.mxu0 0.0
    %1523 = vmatpush1.msra.mxu0 0.0
    %1524 = vmatprep.subr.mxu0 0.0
    %1525 = vmatpush1.msra.mxu0 0.0
    %1526 = vmatprep.subr.mxu0 0.0
    %1527 = vmatpush1.msra.mxu0 0.0
    %1528 = vmatprep.subr.mxu0 0.0
    %1529 = vmatpush1.msra.mxu0 0.0
    %1530 = vmatprep.subr.mxu0 0.0
    %1531 = vmatpush1.msra.mxu0 0.0
    %1532 = vmatprep.subr.mxu0 0.0
    %1533 = vmatpush1.msra.mxu0 0.0
    %1534 = vmatprep.subr.mxu0 0.0
    %1535 = vmatpush1.msra.mxu0 0.0
    %1536 = vmatprep.subr.mxu0 0.0
    %1537 = vmatpush1.msra.mxu0 0.0
    %1538 = vmatprep.subr.mxu0 0.0
    %1539 = vmatpush1.msra.mxu0 0.0
    %1540 = vmatprep.subr.mxu0 0.0
    %1541 = vmatpush1.msra.mxu0 0.0
    %1542 = vmatprep.subr.mxu0 0.0
    %1543 = vmatpush1.msra.mxu0 0.0
    %1544 = vmatprep.subr.mxu0 0.0
    %1545 = vmatpush1.msra.mxu0 0.0
    %1546 = vmatprep.subr.mxu0 0.0
    %1547 = vmatpush1.msra.mxu0 0.0
    %1548 = vmatprep.subr.mxu0 0.0
    %1549 = vmatpush1.msra.mxu0 0.0
    %1550 = vmatprep.subr.mxu0 0.0
    %1551 = vmatpush1.msra.mxu0 0.0
    %1552 = vmatprep.subr.mxu0 0.0
    %1553 = vmatpush1.msra.mxu0 0.0
    %1554 = vmatprep.subr.mxu0 0.0
    %1555 = vmatpush1.msra.mxu0 0.0
    %1556 = vmatprep.subr.mxu0 0.0
    %1557 = vmatpush1.msra.mxu0 0.0
    %1558 = vmatprep.subr.mxu0 0.0
    %1559 = vmatpush1.msra.mxu0 0.0
    %1560 = vmatprep.subr.mxu0 0.0
    %1561 = vmatpush1.msra.mxu0 0.0
    %1562 = vmatprep.subr.mxu0 0.0
    %1563 = vmatpush1.msra.mxu0 0.0
    %1564 = vmatprep.subr.mxu0 0.0
    %1565 = vmatpush1.msra.mxu0 0.0
    %1566 = vmatprep.subr.mxu0 0.0
    %1567 = vmatpush1.msra.mxu0 0.0
    %1568 = vmatprep.mubr.f32.mxu0 0.0
    %1569 = vmatmul.mubr.f32.gmra.mrb[0].mxu0 %v1499
    %v1570 = vpop.f32.mrb[0].mxu0
    %v1571 = vadd.f32 %v1497, %v1570
    %v1572 = vpop.f32.mrb[0].mxu0
    %1573 = vmatprep.mubr.f32.mxu0 0.0
    %1574 = vmatmul.mubr.f32.gmra.mrb[0].mxu0 %v1502
    %v1575 = vpop.f32.mrb[0].mxu0
    %v1576 = vadd.f32 %v1497, %v1575
    %v1577 = vpop.f32.mrb[0].mxu0
    %1578 = vdwg.mxu0
    %v1579 = vadd.f32 %v1571, %v38
    %v1580 = vadd.f32 %v1576, %v39
    %v1581 = vsel %vm49, %v1579, 0.0
    %1582 = vadd.xlane.f32.xlu0 %v1581
    %v1583 = vpop.xlane.xlu0 %1582
    %v1584 = vsel %vm49, %v1580, 0.0
    %1585 = vadd.xlane.f32.xlu0 %v1584
    %v1586 = vpop.xlane.xlu0 %1585
    %v1587 = vrcp.pop 32.0
    %v1588 = vmul.f32 %v1583, %v1587
    %v1589 = vmul.f32 %v1586, %v1587
    %v1590 = vsub.f32 %v1579, %v1588
    %v1591 = vsub.f32 %v1580, %v1589
    %v1592 = vmul.f32 %v1590, %v1590
    %v1593 = vmul.f32 %v1591, %v1591
    %v1594 = vsel %vm49, %v1592, 0.0
    %1595 = vadd.xlane.f32.xlu0 %v1594
    %v1596 = vpop.xlane.xlu0 %1595
    %v1597 = vsel %vm49, %v1593, 0.0
    %1598 = vadd.xlane.f32.xlu0 %v1597
    %v1599 = vpop.xlane.xlu0 %1598
    %v1600 = vmul.f32 %v1596, %v1587
    %v1601 = vmul.f32 %v1599, %v1587
    %v1602 = vadd.f32 %v1600, 1e-05
    %v1603 = vadd.f32 %v1601, 1e-05
    %v1604 = vrsqrt.pop %v1602
    %v1605 = vrsqrt.pop %v1603
    %v1606 = vmul.f32 %v1590, %v1604
    %v1607 = vmul.f32 %v1591, %v1605
    %v1608 = vlaneseq
    %v1609 = vshrl.u32 %v1608, 7
    %v1610 = vsub.s32 2, %v1609
    %v1611 = vrot.slane %v40, %v1610
    %v1612 = vmul.f32 %v1606, %v1611
    %v1613 = vmul.f32 %v1607, %v1611
    %v1614 = vlaneseq
    %v1615 = vshrl.u32 %v1614, 7
    %v1616 = vsub.s32 3, %v1615
    %v1617 = vrot.slane %v40, %v1616
    %v1618 = vadd.f32 %v1612, %v1617
    %v1619 = vadd.f32 %v1613, %v1617
    %v1620 = vld [vmem:[%s3] sm:$0xff]
    %v1621 = vld [vmem:[%s3 + $0x8] sm:$0xff]
    %v1622 = vld [vmem:[%s3 + $0x10] sm:$0xff]
    %v1623 = vld [vmem:[%s3 + $0x18] sm:$0xff]
    %v1624 = vlaneseq
    %v1625 = vshrl.u32 %v1624, 7
    %v1626 = vsub.s32 4, %v1625
    %v1627 = vrot.slane %v40, %v1626
    %v1629 = vsel %vm49, %v1618, 0
    %v1632 = vsel %vm49, %v1619, 0
    %1634 = vmatprep.subr.mxu0 0.0
    %1635 = vmatpush1.msra.mxu0 %v1620
    %1636 = vmatprep.subr.mxu0 0.0
    %1637 = vmatpush1.msra.mxu0 %v1621
    %1638 = vmatprep.subr.mxu0 0.0
    %1639 = vmatpush1.msra.mxu0 %v1622
    %1640 = vmatprep.subr.mxu0 0.0
    %1641 = vmatpush1.msra.mxu0 %v1623
    %1642 = vmatprep.subr.mxu0 0.0
    %1643 = vmatpush1.msra.mxu0 0.0
    %1644 = vmatprep.subr.mxu0 0.0
    %1645 = vmatpush1.msra.mxu0 0.0
    %1646 = vmatprep.subr.mxu0 0.0
    %1647 = vmatpush1.msra.mxu0 0.0
    %1648 = vmatprep.subr.mxu0 0.0
    %1649 = vmatpush1.msra.mxu0 0.0
    %1650 = vmatprep.subr.mxu0 0.0
    %1651 = vmatpush1.msra.mxu0 0.0
    %1652 = vmatprep.subr.mxu0 0.0
    %1653 = vmatpush1.msra.mxu0 0.0
    %1654 = vmatprep.subr.mxu0 0.0
    %1655 = vmatpush1.msra.mxu0 0.0
    %1656 = vmatprep.subr.mxu0 0.0
    %1657 = vmatpush1.msra.mxu0 0.0
    %1658 = vmatprep.subr.mxu0 0.0
    %1659 = vmatpush1.msra.mxu0 0.0
    %1660 = vmatprep.subr.mxu0 0.0
    %1661 = vmatpush1.msra.mxu0 0.0
    %1662 = vmatprep.subr.mxu0 0.0
    %1663 = vmatpush1.msra.mxu0 0.0
    %1664 = vmatprep.subr.mxu0 0.0
    %1665 = vmatpush1.msra.mxu0 0.0
    %1666 = vmatprep.subr.mxu0 0.0
    %1667 = vmatpush1.msra.mxu0 0.0
    %1668 = vmatprep.subr.mxu0 0.0
    %1669 = vmatpush1.msra.mxu0 0.0
    %1670 = vmatprep.subr.mxu0 0.0
    %1671 = vmatpush1.msra.mxu0 0.0
    %1672 = vmatprep.subr.mxu0 0.0
    %1673 = vmatpush1.msra.mxu0 0.0
    %1674 = vmatprep.subr.mxu0 0.0
    %1675 = vmatpush1.msra.mxu0 0.0
    %1676 = vmatprep.subr.mxu0 0.0
    %1677 = vmatpush1.msra.mxu0 0.0
    %1678 = vmatprep.subr.mxu0 0.0
    %1679 = vmatpush1.msra.mxu0 0.0
    %1680 = vmatprep.subr.mxu0 0.0
    %1681 = vmatpush1.msra.mxu0 0.0
    %1682 = vmatprep.subr.mxu0 0.0
    %1683 = vmatpush1.msra.mxu0 0.0
    %1684 = vmatprep.subr.mxu0 0.0
    %1685 = vmatpush1.msra.mxu0 0.0
    %1686 = vmatprep.subr.mxu0 0.0
    %1687 = vmatpush1.msra.mxu0 0.0
    %1688 = vmatprep.subr.mxu0 0.0
    %1689 = vmatpush1.msra.mxu0 0.0
    %1690 = vmatprep.subr.mxu0 0.0
    %1691 = vmatpush1.msra.mxu0 0.0
    %1692 = vmatprep.subr.mxu0 0.0
    %1693 = vmatpush1.msra.mxu0 0.0
    %1694 = vmatprep.subr.mxu0 0.0
    %1695 = vmatpush1.msra.mxu0 0.0
    %1696 = vmatprep.subr.mxu0 0.0
    %1697 = vmatpush1.msra.mxu0 0.0
    %1698 = vmatprep.mubr.f32.mxu0 0.0
    %1699 = vmatmul.mubr.f32.gmra.mrb[0].mxu0 %v1629
    %v1700 = vpop.f32.mrb[0].mxu0
    %v1701 = vadd.f32 %v1627, %v1700
    %v1702 = vpop.f32.mrb[0].mxu0
    %1703 = vmatprep.mubr.f32.mxu0 0.0
    %1704 = vmatmul.mubr.f32.gmra.mrb[0].mxu0 %v1632
    %v1705 = vpop.f32.mrb[0].mxu0
    %v1706 = vadd.f32 %v1627, %v1705
    %v1707 = vpop.f32.mrb[0].mxu0
    %1708 = vdwg.mxu0
    %v1709 = vmax.f32 %v1701, 0.0
    %v1710 = vmax.f32 %v1706, 0.0
    %v1711 = vld [vmem:[%s4] sm:$0xff]
    %v1712 = vld [vmem:[%s4 + $0x8] sm:$0xff]
    %v1713 = vld [vmem:[%s4 + $0x10] sm:$0xff]
    %v1714 = vld [vmem:[%s4 + $0x18] sm:$0xff]
    %v1715 = vld [vmem:[%s4 + $0x20] sm:$0xff]
    %v1716 = vld [vmem:[%s4 + $0x28] sm:$0xff]
    %v1717 = vld [vmem:[%s4 + $0x30] sm:$0xff]
    %v1718 = vld [vmem:[%s4 + $0x38] sm:$0xff]
    %v1719 = vlaneseq
    %v1720 = vshrl.u32 %v1719, 7
    %v1721 = vsub.s32 5, %v1720
    %v1722 = vrot.slane %v40, %v1721
    %vm1723 = vcmask 523264
    %v1725 = vsel %vm1723, %v1709, 0
    %v1728 = vsel %vm1723, %v1710, 0
    %1730 = vmatprep.subr.mxu0 0.0
    %1731 = vmatpush1.msra.mxu0 %v1711
    %1732 = vmatprep.subr.mxu0 0.0
    %1733 = vmatpush1.msra.mxu0 %v1712
    %1734 = vmatprep.subr.mxu0 0.0
    %1735 = vmatpush1.msra.mxu0 %v1713
    %1736 = vmatprep.subr.mxu0 0.0
    %1737 = vmatpush1.msra.mxu0 %v1714
    %1738 = vmatprep.subr.mxu0 0.0
    %1739 = vmatpush1.msra.mxu0 %v1715
    %1740 = vmatprep.subr.mxu0 0.0
    %1741 = vmatpush1.msra.mxu0 %v1716
    %1742 = vmatprep.subr.mxu0 0.0
    %1743 = vmatpush1.msra.mxu0 %v1717
    %1744 = vmatprep.subr.mxu0 0.0
    %1745 = vmatpush1.msra.mxu0 %v1718
    %1746 = vmatprep.subr.mxu0 0.0
    %1747 = vmatpush1.msra.mxu0 0.0
    %1748 = vmatprep.subr.mxu0 0.0
    %1749 = vmatpush1.msra.mxu0 0.0
    %1750 = vmatprep.subr.mxu0 0.0
    %1751 = vmatpush1.msra.mxu0 0.0
    %1752 = vmatprep.subr.mxu0 0.0
    %1753 = vmatpush1.msra.mxu0 0.0
    %1754 = vmatprep.subr.mxu0 0.0
    %1755 = vmatpush1.msra.mxu0 0.0
    %1756 = vmatprep.subr.mxu0 0.0
    %1757 = vmatpush1.msra.mxu0 0.0
    %1758 = vmatprep.subr.mxu0 0.0
    %1759 = vmatpush1.msra.mxu0 0.0
    %1760 = vmatprep.subr.mxu0 0.0
    %1761 = vmatpush1.msra.mxu0 0.0
    %1762 = vmatprep.subr.mxu0 0.0
    %1763 = vmatpush1.msra.mxu0 0.0
    %1764 = vmatprep.subr.mxu0 0.0
    %1765 = vmatpush1.msra.mxu0 0.0
    %1766 = vmatprep.subr.mxu0 0.0
    %1767 = vmatpush1.msra.mxu0 0.0
    %1768 = vmatprep.subr.mxu0 0.0
    %1769 = vmatpush1.msra.mxu0 0.0
    %1770 = vmatprep.subr.mxu0 0.0
    %1771 = vmatpush1.msra.mxu0 0.0
    %1772 = vmatprep.subr.mxu0 0.0
    %1773 = vmatpush1.msra.mxu0 0.0
    %1774 = vmatprep.subr.mxu0 0.0
    %1775 = vmatpush1.msra.mxu0 0.0
    %1776 = vmatprep.subr.mxu0 0.0
    %1777 = vmatpush1.msra.mxu0 0.0
    %1778 = vmatprep.subr.mxu0 0.0
    %1779 = vmatpush1.msra.mxu0 0.0
    %1780 = vmatprep.subr.mxu0 0.0
    %1781 = vmatpush1.msra.mxu0 0.0
    %1782 = vmatprep.subr.mxu0 0.0
    %1783 = vmatpush1.msra.mxu0 0.0
    %1784 = vmatprep.subr.mxu0 0.0
    %1785 = vmatpush1.msra.mxu0 0.0
    %1786 = vmatprep.subr.mxu0 0.0
    %1787 = vmatpush1.msra.mxu0 0.0
    %1788 = vmatprep.subr.mxu0 0.0
    %1789 = vmatpush1.msra.mxu0 0.0
    %1790 = vmatprep.subr.mxu0 0.0
    %1791 = vmatpush1.msra.mxu0 0.0
    %1792 = vmatprep.subr.mxu0 0.0
    %1793 = vmatpush1.msra.mxu0 0.0
    %1794 = vmatprep.mubr.f32.mxu0 0.0
    %1795 = vmatmul.mubr.f32.gmra.mrb[0].mxu0 %v1725
    %v1796 = vpop.f32.mrb[0].mxu0
    %v1797 = vadd.f32 %v1722, %v1796
    %v1798 = vpop.f32.mrb[0].mxu0
    %1799 = vmatprep.mubr.f32.mxu0 0.0
    %1800 = vmatmul.mubr.f32.gmra.mrb[0].mxu0 %v1728
    %v1801 = vpop.f32.mrb[0].mxu0
    %v1802 = vadd.f32 %v1722, %v1801
    %v1803 = vpop.f32.mrb[0].mxu0
    %1804 = vdwg.mxu0
    %v1805 = vadd.f32 %v1797, %v1618
    %v1806 = vadd.f32 %v1802, %v1619
    %v1807 = vsel %vm49, %v1805, 0.0
    %1808 = vadd.xlane.f32.xlu0 %v1807
    %v1809 = vpop.xlane.xlu0 %1808
    %v1810 = vsel %vm49, %v1806, 0.0
    %1811 = vadd.xlane.f32.xlu0 %v1810
    %v1812 = vpop.xlane.xlu0 %1811
    %v1813 = vmul.f32 %v1809, %v1587
    %v1814 = vmul.f32 %v1812, %v1587
    %v1815 = vsub.f32 %v1805, %v1813
    %v1816 = vsub.f32 %v1806, %v1814
    %v1817 = vmul.f32 %v1815, %v1815
    %v1818 = vmul.f32 %v1816, %v1816
    %v1819 = vsel %vm49, %v1817, 0.0
    %1820 = vadd.xlane.f32.xlu0 %v1819
    %v1821 = vpop.xlane.xlu0 %1820
    %v1822 = vsel %vm49, %v1818, 0.0
    %1823 = vadd.xlane.f32.xlu0 %v1822
    %v1824 = vpop.xlane.xlu0 %1823
    %v1825 = vmul.f32 %v1821, %v1587
    %v1826 = vmul.f32 %v1824, %v1587
    %v1827 = vadd.f32 %v1825, 1e-05
    %v1828 = vadd.f32 %v1826, 1e-05
    %v1829 = vrsqrt.pop %v1827
    %v1830 = vrsqrt.pop %v1828
    %v1831 = vmul.f32 %v1815, %v1829
    %v1832 = vmul.f32 %v1816, %v1830
    %v1833 = vlaneseq
    %v1834 = vshrl.u32 %v1833, 7
    %v1835 = vsub.s32 6, %v1834
    %v1836 = vrot.slane %v40, %v1835
    %v1837 = vmul.f32 %v1831, %v1836
    %v1838 = vmul.f32 %v1832, %v1836
    %v1839 = vlaneseq
    %v1840 = vshrl.u32 %v1839, 7
    %v1841 = vsub.s32 7, %v1840
    %v1842 = vrot.slane %v40, %v1841
    %v1843 = vadd.f32 %v1837, %v1842
    %v1844 = vadd.f32 %v1838, %v1842
    %1845 = vst.msk [vmem:[#allocation5] sm:$0xff] %vm49, %v1843
    %1846 = vst.msk [vmem:[#allocation5 + $0x8] sm:$0xff] %vm49, %v1844
    // Predicated region
    $region30: #{tpu_custom_call.1} parent=1 // pred_check
      _
    $region31: #{tpu_custom_call.1} parent=1 // pred_check_branch
      %1848 = sbr.rel (0) target = $region33
    $region32: #{tpu_custom_call.1} parent=1 // pred_region
      %s1850 = ssub.s32 256, 256
      %1851 = vsyncadd [#allocation4], %s1850
      %s1852 = sshll.u32 [#allocation5], 4
      %s1853 = int_to_ptr.vmem [resolvable:$true] %s1852
      %1858 = dma.vmem_to_hbm [thread:$0]  %s1853, 256, %s6, [#allocation4], 128, 128, 8
    $region33: #{tpu_custom_call.1} parent=1 // pred_fallthru
      _
    // Predicated region
    $region34: #{tpu_custom_call.1} parent=1 // pred_check
      _
    $region35: #{tpu_custom_call.1} parent=1 // pred_check_branch
      %1860 = sbr.rel (0) target = $region37
    $region36: #{tpu_custom_call.1} parent=1 // pred_region
      %1861 = dma.done [#allocation4], 256
    $region37: #{tpu_custom_call.1} parent=1 // pred_fallthru
      _
    %1862 = vsyncpa [#allocation3], 1
    %1863 = vsyncpa [#allocation4], 1

</llo_original>
